<compile_context>
chip_gen: v6e
topology: v6e:2x2x1
jax: 0.10.0
libtpu: 0.0.40
codegen_flags: <defaults>
</compile_context>

<pallas_src>
import functools
import math

import jax
import jax.numpy as jnp
from jax import lax
from jax.experimental import pallas as pl
from jax.experimental.pallas import tpu as pltpu

BN_EPS = 1e-5

# ---- tiny version-compat shims (these names moved across JAX releases) ----
_MEMSPACE = getattr(pltpu, "MemorySpace", None) or getattr(pltpu, "TPUMemorySpace")
_VMEM_FULL_SPEC = pl.BlockSpec(memory_space=_MEMSPACE.VMEM)
_COMPILER_PARAMS_CLS = (getattr(pltpu, "CompilerParams", None)
                        or getattr(pltpu, "TPUCompilerParams", None))


def _compiler_params(dimension_semantics):
    if _COMPILER_PARAMS_CLS is None:
        return {}
    return {"compiler_params": _COMPILER_PARAMS_CLS(dimension_semantics=dimension_semantics)}


# ----------------------------- Pallas kernel ------------------------------

def _basic_block_kernel(*refs, stride, H, W, has_downsample, final_relu):
    """One batch element of a BasicBlock, entirely in VMEM.

    refs = (parity inputs [stride*stride] , w1, b1, w2, b2, [wd, bd], out, y1pad_scratch)
      parity input : (R1, Cin)  bf16  flattened padded image (per spatial parity)
      w1           : (9, Cin, planes) bf16 (BN1 folded)     b1: (1, planes) f32
      w2           : (9, planes, planes) bf16 (BN2 folded)  b2: (1, planes) f32
      wd           : (Cin, planes) bf16 (BN folded)         bd: (1, planes) f32
      out          : (Ho*Wo, planes) f32
      y1pad scratch: (R2, planes) bf16 (zero-padded conv2 input grid)
    """
    s = stride
    Ho = (H - 1) // s + 1
    Wo = (W - 1) // s + 1
    if s == 1:
        Hs, Ws = H + 2, W + 2
    else:
        Hs, Ws = (H + 2) // s, (W + 2) // s
    C1 = Ws                      # row pitch of the conv1 (parity) grid
    R1 = Hs * Ws
    C2 = Wo + 2                  # row pitch of the conv2 padded grid
    R2 = (Ho + 2) * C2

    n_par = s * s
    pf = refs[:n_par]
    w1_ref, b1_ref, w2_ref, b2_ref = refs[n_par:n_par + 4]
    i = n_par + 4
    if has_downsample:
        wd_ref, bd_ref = refs[i], refs[i + 1]
        i += 2
    out_ref = refs[i]
    y1pad_ref = refs[i + 1]

    planes = w1_ref.shape[-1]
    La1 = R1 - ((2 // s) * C1 + (2 // s))   # rows accumulated for conv1 (valid ones + a few discarded)
    La2 = R2 - (2 * C2 + 2)                 # rows accumulated for conv2

    # ---- conv1 (BN1 folded into w1/b1) + ReLU : 9 shifted MXU dots ----
    acc1 = jnp.zeros((La1, planes), jnp.float32)
    for di in range(3):
        for dj in range(3):
            k = 3 * di + dj
            pi = (di % s) * s + (dj % s)
            off = (di // s) * C1 + (dj // s)
            acc1 = acc1 + jnp.dot(pf[pi][off:off + La1, :], w1_ref[k],
                                  preferred_element_type=jnp.float32)
    y1 = jnp.maximum(acc1 + b1_ref[...], 0.0).astype(y1pad_ref.dtype)

    # ---- identity / conv1x1(stride)+BN downsample, kept in registers ----
    pi_id = (1 % s) * s + (1 % s)            # the (1,1) tap == centre pixel == 1x1 conv input
    off_id = (1 // s) * C1 + (1 // s)
    id_rows = pf[pi_id][off_id:off_id + La1, :]
    if has_downsample:
        identity = jnp.dot(id_rows, wd_ref[...],
                           preferred_element_type=jnp.float32) + bd_ref[...]
    else:
        identity = id_rows.astype(jnp.float32)

    # ---- re-pad the conv1 output into the conv2 grid (VMEM scratch) ----
    y1pad_ref[...] = jnp.zeros_like(y1pad_ref)
    for ho in range(Ho):
        y1pad_ref[(ho + 1) * C2 + 1:(ho + 1) * C2 + 1 + Wo, :] = (
            y1[ho * C1:ho * C1 + Wo, :])

    # ---- conv2 (BN2 folded into w2/b2) : 9 shifted MXU dots ----
    acc2 = jnp.zeros((La2, planes), jnp.float32)
    for di in range(3):
        for dj in range(3):
            k = 3 * di + dj
            off = di * C2 + dj
            acc2 = acc2 + jnp.dot(y1pad_ref[off:off + La2, :], w2_ref[k],
                                  preferred_element_type=jnp.float32)
    acc2 = acc2 + b2_ref[...]

    # ---- residual add + final ReLU, store only the valid output rows ----
    for ho in range(Ho):
        rows = (acc2[ho * C2:ho * C2 + Wo, :]
                + identity[ho * C1:ho * C1 + Wo, :])
        if final_relu:
            rows = jnp.maximum(rows, 0.0)
        out_ref[ho * Wo:(ho + 1) * Wo, :] = rows.astype(out_ref.dtype)


# ------------------------------ wrappers ----------------------------------

def _parity_flatten(xp, s):
    """Split padded NHWC into its s*s spatial parities and flatten HW -> rows."""
    n, hp, wp, c = xp.shape
    outs = []
    for r in range(s):
        for col in range(s):
            p = xp[:, r::s, col::s, :]
            outs.append(p.reshape(n, p.shape[1] * p.shape[2], c))
    return outs


def basic_block_forward(params, x_nchw, *, stride, final_relu=True):
    """Pallas forward of BasicBlock (inference-mode BN folded into the weights)."""
    s = int(stride)
    n, cin, h, w = x_nchw.shape
    planes = params["w1"].shape[-1]
    has_downsample = "wd" in params
    if s != 1:
        assert h % s == 0 and w % s == 0, "stride-2 path assumes even spatial dims"
    if not has_downsample:
        assert s == 1 and cin == planes, "identity shortcut needs matching shapes"

    ho = (h - 1) // s + 1
    wo = (w - 1) // s + 1
    if s == 1:
        hs, ws = h + 2, w + 2
    else:
        hs, ws = (h + 2) // s, (w + 2) // s
    r1 = hs * ws
    r2 = (ho + 2) * (wo + 2)

    # NCHW -> NHWC (channels on the 128-lane axis), bf16 operands for the MXU.
    x = jnp.transpose(x_nchw, (0, 2, 3, 1)).astype(jnp.bfloat16)
    xp = jnp.pad(x, ((0, 0), (1, 1), (1, 1), (0, 0)))
    pf = _parity_flatten(xp, s)            # no duplication (total size == padded input)

    args = list(pf) + [params["w1"], params["b1"], params["w2"], params["b2"]]
    if has_downsample:
        args += [params["wd"], params["bd"]]

    act_spec = pl.BlockSpec((None, r1, cin), lambda i: (i, 0, 0))
    in_specs = [act_spec] * len(pf) + [_VMEM_FULL_SPEC] * (len(args) - len(pf))

    kernel = functools.partial(
        _basic_block_kernel, stride=s, H=h, W=w,
        has_downsample=has_downsample, final_relu=bool(final_relu))

    out = pl.pallas_call(
        kernel,
        out_shape=jax.ShapeDtypeStruct((n, ho * wo, planes), jnp.float32),
        grid=(n,),                                         # one image per grid step
        in_specs=in_specs,
        out_specs=pl.BlockSpec((None, ho * wo, planes), lambda i: (i, 0, 0)),
        scratch_shapes=[pltpu.VMEM((r2, planes), jnp.bfloat16)],
        **_compiler_params(("parallel",)),                 # megacore on v7x, no-op on 1-TC chips
    )(*args)

    return jnp.transpose(out.reshape(n, ho, wo, planes), (0, 3, 1, 2))


# --------------------------- parameter building ---------------------------

def _kaiming_normal_oihw(key, cout, cin, kh, kw):
    fan_out = cout * kh * kw
    return jax.random.normal(key, (cout, cin, kh, kw), jnp.float32) * math.sqrt(2.0 / fan_out)


def _fold_bn(w_oihw, gamma, beta, mean, var):
    """Fold inference BatchNorm into the conv: ((kh*kw, cin, cout) bf16, (1, cout) f32)."""
    scale = gamma / jnp.sqrt(var + BN_EPS)
    bias = beta - mean * scale
    cout, cin, kh, kw = w_oihw.shape
    w = jnp.transpose(w_oihw, (2, 3, 1, 0)) * scale        # (kh, kw, cin, cout) * (cout,)
    return (w.reshape(kh * kw, cin, cout).astype(jnp.bfloat16),
            bias.reshape(1, cout).astype(jnp.float32))


def make_basic_block_params(key, inplanes, planes, stride, with_downsample):
    k1, k2, k3 = jax.random.split(key, 3)
    # TODO(synk): training-mode BN (batch statistics + running-stat updates) has no clean
    # single-kernel equivalent; we use eval-mode BN with init stats folded into the weights.
    gamma = jnp.ones((planes,), jnp.float32)
    beta = jnp.zeros((planes,), jnp.float32)
    mean = jnp.zeros((planes,), jnp.float32)
    var = jnp.ones((planes,), jnp.float32)

    w1, b1 = _fold_bn(_kaiming_normal_oihw(k1, planes, inplanes, 3, 3), gamma, beta, mean, var)
    w2, b2 = _fold_bn(_kaiming_normal_oihw(k2, planes, planes, 3, 3), gamma, beta, mean, var)
    p = {"w1": w1, "b1": b1, "w2": w2, "b2": b2}
    if with_downsample:        # downsample = conv1x1(stride) + BN (as built by ResNet)
        wd, bd = _fold_bn(_kaiming_normal_oihw(k3, planes, inplanes, 1, 1),
                          gamma, beta, mean, var)
        p["wd"] = wd.reshape(inplanes, planes)
        p["bd"] = bd
    return p


# ------------------------- pure-XLA reference -----------------------------

def basic_block_reference(params, x_nchw, *, stride, final_relu=True):
    """Reference with the same bf16-rounded operands and f32 accumulation."""
    dn = ("NHWC", "HWIO", "NHWC")
    x = jnp.transpose(x_nchw, (0, 2, 3, 1)).astype(jnp.bfloat16).astype(jnp.float32)
    cin, planes = params["w1"].shape[1], params["w1"].shape[2]
    k1 = params["w1"].astype(jnp.float32).reshape(3, 3, cin, planes)
    y = lax.conv_general_dilated(x, k1, (stride, stride), ((1, 1), (1, 1)),
                                 dimension_numbers=dn)
    y = jnp.maximum(y + params["b1"].reshape(1, 1, 1, planes), 0.0)
    y = y.astype(jnp.bfloat16).astype(jnp.float32)   # kernel keeps y1 as bf16 in VMEM
    k2 = params["w2"].astype(jnp.float32).reshape(3, 3, planes, planes)
    z = lax.conv_general_dilated(y, k2, (1, 1), ((1, 1), (1, 1)), dimension_numbers=dn)
    z = z + params["b2"].reshape(1, 1, 1, planes)
    if "wd" in params:
        kd = params["wd"].astype(jnp.float32).reshape(1, 1, cin, planes)
        idn = lax.conv_general_dilated(x, kd, (stride, stride), ((0, 0), (0, 0)),
                                       dimension_numbers=dn)
        idn = idn + params["bd"].reshape(1, 1, 1, planes)
    else:
        idn = x
    z = z + idn
    if final_relu:
        z = jnp.maximum(z, 0.0)
    return jnp.transpose(z, (0, 3, 1, 2))


# --------------------------------- main ------------------------------------

if __name__ == "__main__":
    key = jax.random.PRNGKey(0)
    kp1, kp2, kx = jax.random.split(key, 3)

    N, C_IN, H, W = 2, 64, 8, 8
    PLANES = 128

    # block 1: stride-2 block with conv1x1+BN downsample (typical first block of a stage)
    p1 = make_basic_block_params(kp1, C_IN, PLANES, stride=2, with_downsample=True)
    # block 2: stride-1 block with identity shortcut
    p2 = make_basic_block_params(kp2, PLANES, PLANES, stride=1, with_downsample=False)

    x = jax.random.normal(kx, (N, C_IN, H, W), jnp.float32)

    fwd1 = jax.jit(functools.partial(basic_block_forward, stride=2))
    fwd2 = jax.jit(functools.partial(basic_block_forward, stride=1))

    y1 = fwd1(p1, x)
    y2 = fwd2(p2, y1)
    jax.block_until_ready(y2)

    assert y1.shape == (N, PLANES, H // 2, W // 2), y1.shape
    assert y2.shape == (N, PLANES, H // 2, W // 2), y2.shape

    # correctness check against a pure-XLA reference of the same computation
    r1 = basic_block_reference(p1, x, stride=2)
    r2 = basic_block_reference(p2, y1, stride=1)
    e1 = float(jnp.max(jnp.abs(y1 - r1)))
    e2 = float(jnp.max(jnp.abs(y2 - r2)))
    assert e1 < 2e-2 and e2 < 2e-2, (e1, e2)

    print("KERNEL_OK")
</pallas_src>

<mosaic_0001>
module attributes {stable_mosaic.version = 11 : i64} {
  func.func @_basic_block_kernel(%arg0: i32, %arg1: memref<1x25x64xbf16, #tpu.memory_space<vmem>>, %arg2: memref<1x25x64xbf16, #tpu.memory_space<vmem>>, %arg3: memref<1x25x64xbf16, #tpu.memory_space<vmem>>, %arg4: memref<1x25x64xbf16, #tpu.memory_space<vmem>>, %arg5: memref<9x64x128xbf16, #tpu.memory_space<vmem>>, %arg6: memref<1x128xf32, #tpu.memory_space<vmem>>, %arg7: memref<9x128x128xbf16, #tpu.memory_space<vmem>>, %arg8: memref<1x128xf32, #tpu.memory_space<vmem>>, %arg9: memref<64x128xbf16, #tpu.memory_space<vmem>>, %arg10: memref<1x128xf32, #tpu.memory_space<vmem>>, %arg11: memref<1x16x128xf32, #tpu.memory_space<vmem>>, %arg12: memref<36x128xbf16, #tpu.memory_space<vmem>>) attributes {dimension_semantics = [#tpu.dimension_semantics<parallel>], iteration_bounds = array<i64: 2>, scalar_prefetch = 0 : i64, scratch_operands = 1 : i64, tpu.core_type = #tpu.core_type<tc>, window_params = [{transform_indices = @transform_0, window_bounds = array<i64: 1, 25, 64>}, {transform_indices = @transform_1, window_bounds = array<i64: 1, 25, 64>}, {transform_indices = @transform_2, window_bounds = array<i64: 1, 25, 64>}, {transform_indices = @transform_3, window_bounds = array<i64: 1, 25, 64>}, {pipeline_mode = #tpu.pipeline_mode<synchronous>, transform_indices = @transform_4, window_bounds = array<i64: 9, 64, 128>}, {pipeline_mode = #tpu.pipeline_mode<synchronous>, transform_indices = @transform_5, window_bounds = array<i64: 1, 128>}, {pipeline_mode = #tpu.pipeline_mode<synchronous>, transform_indices = @transform_6, window_bounds = array<i64: 9, 128, 128>}, {pipeline_mode = #tpu.pipeline_mode<synchronous>, transform_indices = @transform_7, window_bounds = array<i64: 1, 128>}, {pipeline_mode = #tpu.pipeline_mode<synchronous>, transform_indices = @transform_8, window_bounds = array<i64: 64, 128>}, {pipeline_mode = #tpu.pipeline_mode<synchronous>, transform_indices = @transform_9, window_bounds = array<i64: 1, 128>}, {transform_indices = @transform_10, window_bounds = array<i64: 1, 16, 128>}]} {
    %cst = arith.constant 0.000000e+00 : f32
    %0 = vector.broadcast %cst : f32 to vector<19x128xf32>
    %c0 = arith.constant 0 : index
    %c0_0 = arith.constant 0 : index
    %c0_1 = arith.constant 0 : index
    %1 = vector.load %arg1[%c0, %c0_0, %c0_1] : memref<1x25x64xbf16, #tpu.memory_space<vmem>>, vector<1x19x64xbf16>
    %2 = vector.shape_cast %1 : vector<1x19x64xbf16> to vector<19x64xbf16>
    %c0_2 = arith.constant 0 : index
    %c0_3 = arith.constant 0 : index
    %c0_4 = arith.constant 0 : index
    %3 = vector.load %arg5[%c0_2, %c0_3, %c0_4] : memref<9x64x128xbf16, #tpu.memory_space<vmem>>, vector<1x64x128xbf16>
    %4 = vector.shape_cast %3 : vector<1x64x128xbf16> to vector<64x128xbf16>
    %cst_5 = arith.constant dense<0.000000e+00> : vector<19x128xf32>
    %5 = tpu.matmul %2, %4, %cst_5 {dimension_numbers = #tpu.dot_dimension_numbers<[1], [0], [0], [1], [0, 0, 1, 1], [], []>} : vector<19x64xbf16>, vector<64x128xbf16>, vector<19x128xf32> -> vector<19x128xf32>
    %6 = arith.addf %0, %5 : vector<19x128xf32>
    %c0_6 = arith.constant 0 : index
    %c0_7 = arith.constant 0 : index
    %c0_8 = arith.constant 0 : index
    %7 = vector.load %arg2[%c0_6, %c0_7, %c0_8] : memref<1x25x64xbf16, #tpu.memory_space<vmem>>, vector<1x19x64xbf16>
    %8 = vector.shape_cast %7 : vector<1x19x64xbf16> to vector<19x64xbf16>
    %c1 = arith.constant 1 : index
    %c0_9 = arith.constant 0 : index
    %c0_10 = arith.constant 0 : index
    %9 = vector.load %arg5[%c1, %c0_9, %c0_10] : memref<9x64x128xbf16, #tpu.memory_space<vmem>>, vector<1x64x128xbf16>
    %10 = vector.shape_cast %9 : vector<1x64x128xbf16> to vector<64x128xbf16>
    %cst_11 = arith.constant dense<0.000000e+00> : vector<19x128xf32>
    %11 = tpu.matmul %8, %10, %cst_11 {dimension_numbers = #tpu.dot_dimension_numbers<[1], [0], [0], [1], [0, 0, 1, 1], [], []>} : vector<19x64xbf16>, vector<64x128xbf16>, vector<19x128xf32> -> vector<19x128xf32>
    %12 = arith.addf %6, %11 : vector<19x128xf32>
    %c0_12 = arith.constant 0 : index
    %c1_13 = arith.constant 1 : index
    %c0_14 = arith.constant 0 : index
    %13 = vector.load %arg1[%c0_12, %c1_13, %c0_14] : memref<1x25x64xbf16, #tpu.memory_space<vmem>>, vector<1x19x64xbf16>
    %14 = vector.shape_cast %13 : vector<1x19x64xbf16> to vector<19x64xbf16>
    %c2 = arith.constant 2 : index
    %c0_15 = arith.constant 0 : index
    %c0_16 = arith.constant 0 : index
    %15 = vector.load %arg5[%c2, %c0_15, %c0_16] : memref<9x64x128xbf16, #tpu.memory_space<vmem>>, vector<1x64x128xbf16>
    %16 = vector.shape_cast %15 : vector<1x64x128xbf16> to vector<64x128xbf16>
    %cst_17 = arith.constant dense<0.000000e+00> : vector<19x128xf32>
    %17 = tpu.matmul %14, %16, %cst_17 {dimension_numbers = #tpu.dot_dimension_numbers<[1], [0], [0], [1], [0, 0, 1, 1], [], []>} : vector<19x64xbf16>, vector<64x128xbf16>, vector<19x128xf32> -> vector<19x128xf32>
    %18 = arith.addf %12, %17 : vector<19x128xf32>
    %c0_18 = arith.constant 0 : index
    %c0_19 = arith.constant 0 : index
    %c0_20 = arith.constant 0 : index
    %19 = vector.load %arg3[%c0_18, %c0_19, %c0_20] : memref<1x25x64xbf16, #tpu.memory_space<vmem>>, vector<1x19x64xbf16>
    %20 = vector.shape_cast %19 : vector<1x19x64xbf16> to vector<19x64xbf16>
    %c3 = arith.constant 3 : index
    %c0_21 = arith.constant 0 : index
    %c0_22 = arith.constant 0 : index
    %21 = vector.load %arg5[%c3, %c0_21, %c0_22] : memref<9x64x128xbf16, #tpu.memory_space<vmem>>, vector<1x64x128xbf16>
    %22 = vector.shape_cast %21 : vector<1x64x128xbf16> to vector<64x128xbf16>
    %cst_23 = arith.constant dense<0.000000e+00> : vector<19x128xf32>
    %23 = tpu.matmul %20, %22, %cst_23 {dimension_numbers = #tpu.dot_dimension_numbers<[1], [0], [0], [1], [0, 0, 1, 1], [], []>} : vector<19x64xbf16>, vector<64x128xbf16>, vector<19x128xf32> -> vector<19x128xf32>
    %24 = arith.addf %18, %23 : vector<19x128xf32>
    %c0_24 = arith.constant 0 : index
    %c0_25 = arith.constant 0 : index
    %c0_26 = arith.constant 0 : index
    %25 = vector.load %arg4[%c0_24, %c0_25, %c0_26] : memref<1x25x64xbf16, #tpu.memory_space<vmem>>, vector<1x19x64xbf16>
    %26 = vector.shape_cast %25 : vector<1x19x64xbf16> to vector<19x64xbf16>
    %c4 = arith.constant 4 : index
    %c0_27 = arith.constant 0 : index
    %c0_28 = arith.constant 0 : index
    %27 = vector.load %arg5[%c4, %c0_27, %c0_28] : memref<9x64x128xbf16, #tpu.memory_space<vmem>>, vector<1x64x128xbf16>
    %28 = vector.shape_cast %27 : vector<1x64x128xbf16> to vector<64x128xbf16>
    %cst_29 = arith.constant dense<0.000000e+00> : vector<19x128xf32>
    %29 = tpu.matmul %26, %28, %cst_29 {dimension_numbers = #tpu.dot_dimension_numbers<[1], [0], [0], [1], [0, 0, 1, 1], [], []>} : vector<19x64xbf16>, vector<64x128xbf16>, vector<19x128xf32> -> vector<19x128xf32>
    %30 = arith.addf %24, %29 : vector<19x128xf32>
    %c0_30 = arith.constant 0 : index
    %c1_31 = arith.constant 1 : index
    %c0_32 = arith.constant 0 : index
    %31 = vector.load %arg3[%c0_30, %c1_31, %c0_32] : memref<1x25x64xbf16, #tpu.memory_space<vmem>>, vector<1x19x64xbf16>
    %32 = vector.shape_cast %31 : vector<1x19x64xbf16> to vector<19x64xbf16>
    %c5 = arith.constant 5 : index
    %c0_33 = arith.constant 0 : index
    %c0_34 = arith.constant 0 : index
    %33 = vector.load %arg5[%c5, %c0_33, %c0_34] : memref<9x64x128xbf16, #tpu.memory_space<vmem>>, vector<1x64x128xbf16>
    %34 = vector.shape_cast %33 : vector<1x64x128xbf16> to vector<64x128xbf16>
    %cst_35 = arith.constant dense<0.000000e+00> : vector<19x128xf32>
    %35 = tpu.matmul %32, %34, %cst_35 {dimension_numbers = #tpu.dot_dimension_numbers<[1], [0], [0], [1], [0, 0, 1, 1], [], []>} : vector<19x64xbf16>, vector<64x128xbf16>, vector<19x128xf32> -> vector<19x128xf32>
    %36 = arith.addf %30, %35 : vector<19x128xf32>
    %c0_36 = arith.constant 0 : index
    %c5_37 = arith.constant 5 : index
    %c0_38 = arith.constant 0 : index
    %37 = vector.load %arg1[%c0_36, %c5_37, %c0_38] : memref<1x25x64xbf16, #tpu.memory_space<vmem>>, vector<1x19x64xbf16>
    %38 = vector.shape_cast %37 : vector<1x19x64xbf16> to vector<19x64xbf16>
    %c6 = arith.constant 6 : index
    %c0_39 = arith.constant 0 : index
    %c0_40 = arith.constant 0 : index
    %39 = vector.load %arg5[%c6, %c0_39, %c0_40] : memref<9x64x128xbf16, #tpu.memory_space<vmem>>, vector<1x64x128xbf16>
    %40 = vector.shape_cast %39 : vector<1x64x128xbf16> to vector<64x128xbf16>
    %cst_41 = arith.constant dense<0.000000e+00> : vector<19x128xf32>
    %41 = tpu.matmul %38, %40, %cst_41 {dimension_numbers = #tpu.dot_dimension_numbers<[1], [0], [0], [1], [0, 0, 1, 1], [], []>} : vector<19x64xbf16>, vector<64x128xbf16>, vector<19x128xf32> -> vector<19x128xf32>
    %42 = arith.addf %36, %41 : vector<19x128xf32>
    %c0_42 = arith.constant 0 : index
    %c5_43 = arith.constant 5 : index
    %c0_44 = arith.constant 0 : index
    %43 = vector.load %arg2[%c0_42, %c5_43, %c0_44] : memref<1x25x64xbf16, #tpu.memory_space<vmem>>, vector<1x19x64xbf16>
    %44 = vector.shape_cast %43 : vector<1x19x64xbf16> to vector<19x64xbf16>
    %c7 = arith.constant 7 : index
    %c0_45 = arith.constant 0 : index
    %c0_46 = arith.constant 0 : index
    %45 = vector.load %arg5[%c7, %c0_45, %c0_46] : memref<9x64x128xbf16, #tpu.memory_space<vmem>>, vector<1x64x128xbf16>
    %46 = vector.shape_cast %45 : vector<1x64x128xbf16> to vector<64x128xbf16>
    %cst_47 = arith.constant dense<0.000000e+00> : vector<19x128xf32>
    %47 = tpu.matmul %44, %46, %cst_47 {dimension_numbers = #tpu.dot_dimension_numbers<[1], [0], [0], [1], [0, 0, 1, 1], [], []>} : vector<19x64xbf16>, vector<64x128xbf16>, vector<19x128xf32> -> vector<19x128xf32>
    %48 = arith.addf %42, %47 : vector<19x128xf32>
    %c0_48 = arith.constant 0 : index
    %c6_49 = arith.constant 6 : index
    %c0_50 = arith.constant 0 : index
    %49 = vector.load %arg1[%c0_48, %c6_49, %c0_50] : memref<1x25x64xbf16, #tpu.memory_space<vmem>>, vector<1x19x64xbf16>
    %50 = vector.shape_cast %49 : vector<1x19x64xbf16> to vector<19x64xbf16>
    %c8 = arith.constant 8 : index
    %c0_51 = arith.constant 0 : index
    %c0_52 = arith.constant 0 : index
    %51 = vector.load %arg5[%c8, %c0_51, %c0_52] : memref<9x64x128xbf16, #tpu.memory_space<vmem>>, vector<1x64x128xbf16>
    %52 = vector.shape_cast %51 : vector<1x64x128xbf16> to vector<64x128xbf16>
    %cst_53 = arith.constant dense<0.000000e+00> : vector<19x128xf32>
    %53 = tpu.matmul %50, %52, %cst_53 {dimension_numbers = #tpu.dot_dimension_numbers<[1], [0], [0], [1], [0, 0, 1, 1], [], []>} : vector<19x64xbf16>, vector<64x128xbf16>, vector<19x128xf32> -> vector<19x128xf32>
    %54 = arith.addf %48, %53 : vector<19x128xf32>
    %c0_54 = arith.constant 0 : index
    %c0_55 = arith.constant 0 : index
    %55 = vector.load %arg6[%c0_54, %c0_55] : memref<1x128xf32, #tpu.memory_space<vmem>>, vector<1x128xf32>
    %56 = vector.broadcast %55 : vector<1x128xf32> to vector<19x128xf32>
    %57 = arith.addf %54, %56 : vector<19x128xf32>
    %cst_56 = arith.constant 0.000000e+00 : f32
    %58 = vector.broadcast %cst_56 : f32 to vector<19x128xf32>
    %59 = arith.maximumf %57, %58 : vector<19x128xf32>
    %60 = arith.truncf %59 : vector<19x128xf32> to vector<19x128xbf16>
    %c0_57 = arith.constant 0 : index
    %c0_58 = arith.constant 0 : index
    %c0_59 = arith.constant 0 : index
    %61 = vector.load %arg4[%c0_57, %c0_58, %c0_59] : memref<1x25x64xbf16, #tpu.memory_space<vmem>>, vector<1x19x64xbf16>
    %62 = vector.shape_cast %61 : vector<1x19x64xbf16> to vector<19x64xbf16>
    %c0_60 = arith.constant 0 : index
    %c0_61 = arith.constant 0 : index
    %63 = vector.load %arg9[%c0_60, %c0_61] : memref<64x128xbf16, #tpu.memory_space<vmem>>, vector<64x128xbf16>
    %cst_62 = arith.constant dense<0.000000e+00> : vector<19x128xf32>
    %64 = tpu.matmul %62, %63, %cst_62 {dimension_numbers = #tpu.dot_dimension_numbers<[1], [0], [0], [1], [0, 0, 1, 1], [], []>} : vector<19x64xbf16>, vector<64x128xbf16>, vector<19x128xf32> -> vector<19x128xf32>
    %c0_63 = arith.constant 0 : index
    %c0_64 = arith.constant 0 : index
    %65 = vector.load %arg10[%c0_63, %c0_64] : memref<1x128xf32, #tpu.memory_space<vmem>>, vector<1x128xf32>
    %66 = vector.broadcast %65 : vector<1x128xf32> to vector<19x128xf32>
    %67 = arith.addf %64, %66 : vector<19x128xf32>
    %cst_65 = arith.constant 0.000000e+00 : bf16
    %68 = vector.broadcast %cst_65 : bf16 to vector<36x128xbf16>
    %c0_66 = arith.constant 0 : index
    %c0_67 = arith.constant 0 : index
    %69 = vector.load %arg12[%c0_66, %c0_67] : memref<36x128xbf16, #tpu.memory_space<vmem>>, vector<36x128xbf16>
    tpu.vector_store %arg12[%c0_66, %c0_67], %68 {strides = array<i32>} : memref<36x128xbf16, #tpu.memory_space<vmem>>, vector<36x128xbf16>,
    %70 = vector.extract_strided_slice %60 {offsets = [0, 0], sizes = [4, 128], strides = [1, 1]} : vector<19x128xbf16> to vector<4x128xbf16>
    %c7_68 = arith.constant 7 : index
    %c0_69 = arith.constant 0 : index
    %71 = vector.load %arg12[%c7_68, %c0_69] : memref<36x128xbf16, #tpu.memory_space<vmem>>, vector<4x128xbf16>
    tpu.vector_store %arg12[%c7_68, %c0_69], %70 {strides = array<i32>} : memref<36x128xbf16, #tpu.memory_space<vmem>>, vector<4x128xbf16>,
    %72 = vector.extract_strided_slice %60 {offsets = [5, 0], sizes = [4, 128], strides = [1, 1]} : vector<19x128xbf16> to vector<4x128xbf16>
    %c13 = arith.constant 13 : index
    %c0_70 = arith.constant 0 : index
    %73 = vector.load %arg12[%c13, %c0_70] : memref<36x128xbf16, #tpu.memory_space<vmem>>, vector<4x128xbf16>
    tpu.vector_store %arg12[%c13, %c0_70], %72 {strides = array<i32>} : memref<36x128xbf16, #tpu.memory_space<vmem>>, vector<4x128xbf16>,
    %74 = vector.extract_strided_slice %60 {offsets = [10, 0], sizes = [4, 128], strides = [1, 1]} : vector<19x128xbf16> to vector<4x128xbf16>
    %c19 = arith.constant 19 : index
    %c0_71 = arith.constant 0 : index
    %75 = vector.load %arg12[%c19, %c0_71] : memref<36x128xbf16, #tpu.memory_space<vmem>>, vector<4x128xbf16>
    tpu.vector_store %arg12[%c19, %c0_71], %74 {strides = array<i32>} : memref<36x128xbf16, #tpu.memory_space<vmem>>, vector<4x128xbf16>,
    %76 = vector.extract_strided_slice %60 {offsets = [15, 0], sizes = [4, 128], strides = [1, 1]} : vector<19x128xbf16> to vector<4x128xbf16>
    %c25 = arith.constant 25 : index
    %c0_72 = arith.constant 0 : index
    %77 = vector.load %arg12[%c25, %c0_72] : memref<36x128xbf16, #tpu.memory_space<vmem>>, vector<4x128xbf16>
    tpu.vector_store %arg12[%c25, %c0_72], %76 {strides = array<i32>} : memref<36x128xbf16, #tpu.memory_space<vmem>>, vector<4x128xbf16>,
    %cst_73 = arith.constant 0.000000e+00 : f32
    %78 = vector.broadcast %cst_73 : f32 to vector<22x128xf32>
    %c0_74 = arith.constant 0 : index
    %c0_75 = arith.constant 0 : index
    %79 = vector.load %arg12[%c0_74, %c0_75] : memref<36x128xbf16, #tpu.memory_space<vmem>>, vector<22x128xbf16>
    %c0_76 = arith.constant 0 : index
    %c0_77 = arith.constant 0 : index
    %c0_78 = arith.constant 0 : index
    %80 = vector.load %arg7[%c0_76, %c0_77, %c0_78] : memref<9x128x128xbf16, #tpu.memory_space<vmem>>, vector<1x128x128xbf16>
    %81 = vector.shape_cast %80 : vector<1x128x128xbf16> to vector<128x128xbf16>
    %cst_79 = arith.constant dense<0.000000e+00> : vector<22x128xf32>
    %82 = tpu.matmul %79, %81, %cst_79 {dimension_numbers = #tpu.dot_dimension_numbers<[1], [0], [0], [1], [0, 0, 1, 1], [], []>} : vector<22x128xbf16>, vector<128x128xbf16>, vector<22x128xf32> -> vector<22x128xf32>
    %83 = arith.addf %78, %82 : vector<22x128xf32>
    %c1_80 = arith.constant 1 : index
    %c0_81 = arith.constant 0 : index
    %84 = vector.load %arg12[%c1_80, %c0_81] : memref<36x128xbf16, #tpu.memory_space<vmem>>, vector<22x128xbf16>
    %c1_82 = arith.constant 1 : index
    %c0_83 = arith.constant 0 : index
    %c0_84 = arith.constant 0 : index
    %85 = vector.load %arg7[%c1_82, %c0_83, %c0_84] : memref<9x128x128xbf16, #tpu.memory_space<vmem>>, vector<1x128x128xbf16>
    %86 = vector.shape_cast %85 : vector<1x128x128xbf16> to vector<128x128xbf16>
    %cst_85 = arith.constant dense<0.000000e+00> : vector<22x128xf32>
    %87 = tpu.matmul %84, %86, %cst_85 {dimension_numbers = #tpu.dot_dimension_numbers<[1], [0], [0], [1], [0, 0, 1, 1], [], []>} : vector<22x128xbf16>, vector<128x128xbf16>, vector<22x128xf32> -> vector<22x128xf32>
    %88 = arith.addf %83, %87 : vector<22x128xf32>
    %c2_86 = arith.constant 2 : index
    %c0_87 = arith.constant 0 : index
    %89 = vector.load %arg12[%c2_86, %c0_87] : memref<36x128xbf16, #tpu.memory_space<vmem>>, vector<22x128xbf16>
    %c2_88 = arith.constant 2 : index
    %c0_89 = arith.constant 0 : index
    %c0_90 = arith.constant 0 : index
    %90 = vector.load %arg7[%c2_88, %c0_89, %c0_90] : memref<9x128x128xbf16, #tpu.memory_space<vmem>>, vector<1x128x128xbf16>
    %91 = vector.shape_cast %90 : vector<1x128x128xbf16> to vector<128x128xbf16>
    %cst_91 = arith.constant dense<0.000000e+00> : vector<22x128xf32>
    %92 = tpu.matmul %89, %91, %cst_91 {dimension_numbers = #tpu.dot_dimension_numbers<[1], [0], [0], [1], [0, 0, 1, 1], [], []>} : vector<22x128xbf16>, vector<128x128xbf16>, vector<22x128xf32> -> vector<22x128xf32>
    %93 = arith.addf %88, %92 : vector<22x128xf32>
    %c6_92 = arith.constant 6 : index
    %c0_93 = arith.constant 0 : index
    %94 = vector.load %arg12[%c6_92, %c0_93] : memref<36x128xbf16, #tpu.memory_space<vmem>>, vector<22x128xbf16>
    %c3_94 = arith.constant 3 : index
    %c0_95 = arith.constant 0 : index
    %c0_96 = arith.constant 0 : index
    %95 = vector.load %arg7[%c3_94, %c0_95, %c0_96] : memref<9x128x128xbf16, #tpu.memory_space<vmem>>, vector<1x128x128xbf16>
    %96 = vector.shape_cast %95 : vector<1x128x128xbf16> to vector<128x128xbf16>
    %cst_97 = arith.constant dense<0.000000e+00> : vector<22x128xf32>
    %97 = tpu.matmul %94, %96, %cst_97 {dimension_numbers = #tpu.dot_dimension_numbers<[1], [0], [0], [1], [0, 0, 1, 1], [], []>} : vector<22x128xbf16>, vector<128x128xbf16>, vector<22x128xf32> -> vector<22x128xf32>
    %98 = arith.addf %93, %97 : vector<22x128xf32>
    %c7_98 = arith.constant 7 : index
    %c0_99 = arith.constant 0 : index
    %99 = vector.load %arg12[%c7_98, %c0_99] : memref<36x128xbf16, #tpu.memory_space<vmem>>, vector<22x128xbf16>
    %c4_100 = arith.constant 4 : index
    %c0_101 = arith.constant 0 : index
    %c0_102 = arith.constant 0 : index
    %100 = vector.load %arg7[%c4_100, %c0_101, %c0_102] : memref<9x128x128xbf16, #tpu.memory_space<vmem>>, vector<1x128x128xbf16>
    %101 = vector.shape_cast %100 : vector<1x128x128xbf16> to vector<128x128xbf16>
    %cst_103 = arith.constant dense<0.000000e+00> : vector<22x128xf32>
    %102 = tpu.matmul %99, %101, %cst_103 {dimension_numbers = #tpu.dot_dimension_numbers<[1], [0], [0], [1], [0, 0, 1, 1], [], []>} : vector<22x128xbf16>, vector<128x128xbf16>, vector<22x128xf32> -> vector<22x128xf32>
    %103 = arith.addf %98, %102 : vector<22x128xf32>
    %c8_104 = arith.constant 8 : index
    %c0_105 = arith.constant 0 : index
    %104 = vector.load %arg12[%c8_104, %c0_105] : memref<36x128xbf16, #tpu.memory_space<vmem>>, vector<22x128xbf16>
    %c5_106 = arith.constant 5 : index
    %c0_107 = arith.constant 0 : index
    %c0_108 = arith.constant 0 : index
    %105 = vector.load %arg7[%c5_106, %c0_107, %c0_108] : memref<9x128x128xbf16, #tpu.memory_space<vmem>>, vector<1x128x128xbf16>
    %106 = vector.shape_cast %105 : vector<1x128x128xbf16> to vector<128x128xbf16>
    %cst_109 = arith.constant dense<0.000000e+00> : vector<22x128xf32>
    %107 = tpu.matmul %104, %106, %cst_109 {dimension_numbers = #tpu.dot_dimension_numbers<[1], [0], [0], [1], [0, 0, 1, 1], [], []>} : vector<22x128xbf16>, vector<128x128xbf16>, vector<22x128xf32> -> vector<22x128xf32>
    %108 = arith.addf %103, %107 : vector<22x128xf32>
    %c12 = arith.constant 12 : index
    %c0_110 = arith.constant 0 : index
    %109 = vector.load %arg12[%c12, %c0_110] : memref<36x128xbf16, #tpu.memory_space<vmem>>, vector<22x128xbf16>
    %c6_111 = arith.constant 6 : index
    %c0_112 = arith.constant 0 : index
    %c0_113 = arith.constant 0 : index
    %110 = vector.load %arg7[%c6_111, %c0_112, %c0_113] : memref<9x128x128xbf16, #tpu.memory_space<vmem>>, vector<1x128x128xbf16>
    %111 = vector.shape_cast %110 : vector<1x128x128xbf16> to vector<128x128xbf16>
    %cst_114 = arith.constant dense<0.000000e+00> : vector<22x128xf32>
    %112 = tpu.matmul %109, %111, %cst_114 {dimension_numbers = #tpu.dot_dimension_numbers<[1], [0], [0], [1], [0, 0, 1, 1], [], []>} : vector<22x128xbf16>, vector<128x128xbf16>, vector<22x128xf32> -> vector<22x128xf32>
    %113 = arith.addf %108, %112 : vector<22x128xf32>
    %c13_115 = arith.constant 13 : index
    %c0_116 = arith.constant 0 : index
    %114 = vector.load %arg12[%c13_115, %c0_116] : memref<36x128xbf16, #tpu.memory_space<vmem>>, vector<22x128xbf16>
    %c7_117 = arith.constant 7 : index
    %c0_118 = arith.constant 0 : index
    %c0_119 = arith.constant 0 : index
    %115 = vector.load %arg7[%c7_117, %c0_118, %c0_119] : memref<9x128x128xbf16, #tpu.memory_space<vmem>>, vector<1x128x128xbf16>
    %116 = vector.shape_cast %115 : vector<1x128x128xbf16> to vector<128x128xbf16>
    %cst_120 = arith.constant dense<0.000000e+00> : vector<22x128xf32>
    %117 = tpu.matmul %114, %116, %cst_120 {dimension_numbers = #tpu.dot_dimension_numbers<[1], [0], [0], [1], [0, 0, 1, 1], [], []>} : vector<22x128xbf16>, vector<128x128xbf16>, vector<22x128xf32> -> vector<22x128xf32>
    %118 = arith.addf %113, %117 : vector<22x128xf32>
    %c14 = arith.constant 14 : index
    %c0_121 = arith.constant 0 : index
    %119 = vector.load %arg12[%c14, %c0_121] : memref<36x128xbf16, #tpu.memory_space<vmem>>, vector<22x128xbf16>
    %c8_122 = arith.constant 8 : index
    %c0_123 = arith.constant 0 : index
    %c0_124 = arith.constant 0 : index
    %120 = vector.load %arg7[%c8_122, %c0_123, %c0_124] : memref<9x128x128xbf16, #tpu.memory_space<vmem>>, vector<1x128x128xbf16>
    %121 = vector.shape_cast %120 : vector<1x128x128xbf16> to vector<128x128xbf16>
    %cst_125 = arith.constant dense<0.000000e+00> : vector<22x128xf32>
    %122 = tpu.matmul %119, %121, %cst_125 {dimension_numbers = #tpu.dot_dimension_numbers<[1], [0], [0], [1], [0, 0, 1, 1], [], []>} : vector<22x128xbf16>, vector<128x128xbf16>, vector<22x128xf32> -> vector<22x128xf32>
    %123 = arith.addf %118, %122 : vector<22x128xf32>
    %c0_126 = arith.constant 0 : index
    %c0_127 = arith.constant 0 : index
    %124 = vector.load %arg8[%c0_126, %c0_127] : memref<1x128xf32, #tpu.memory_space<vmem>>, vector<1x128xf32>
    %125 = vector.broadcast %124 : vector<1x128xf32> to vector<22x128xf32>
    %126 = arith.addf %123, %125 : vector<22x128xf32>
    %127 = vector.extract_strided_slice %126 {offsets = [0, 0], sizes = [4, 128], strides = [1, 1]} : vector<22x128xf32> to vector<4x128xf32>
    %128 = vector.extract_strided_slice %67 {offsets = [0, 0], sizes = [4, 128], strides = [1, 1]} : vector<19x128xf32> to vector<4x128xf32>
    %129 = arith.addf %127, %128 : vector<4x128xf32>
    %cst_128 = arith.constant 0.000000e+00 : f32
    %130 = vector.broadcast %cst_128 : f32 to vector<4x128xf32>
    %131 = arith.maximumf %129, %130 : vector<4x128xf32>
    %c0_129 = arith.constant 0 : index
    %c0_130 = arith.constant 0 : index
    %c0_131 = arith.constant 0 : index
    %132 = vector.load %arg11[%c0_129, %c0_130, %c0_131] : memref<1x16x128xf32, #tpu.memory_space<vmem>>, vector<1x4x128xf32>
    %133 = vector.shape_cast %132 : vector<1x4x128xf32> to vector<4x128xf32>
    %134 = vector.shape_cast %131 : vector<4x128xf32> to vector<1x4x128xf32>
    tpu.vector_store %arg11[%c0_129, %c0_130, %c0_131], %134 {strides = array<i32>} : memref<1x16x128xf32, #tpu.memory_space<vmem>>, vector<1x4x128xf32>,
    %135 = vector.extract_strided_slice %126 {offsets = [6, 0], sizes = [4, 128], strides = [1, 1]} : vector<22x128xf32> to vector<4x128xf32>
    %136 = vector.extract_strided_slice %67 {offsets = [5, 0], sizes = [4, 128], strides = [1, 1]} : vector<19x128xf32> to vector<4x128xf32>
    %137 = arith.addf %135, %136 : vector<4x128xf32>
    %cst_132 = arith.constant 0.000000e+00 : f32
    %138 = vector.broadcast %cst_132 : f32 to vector<4x128xf32>
    %139 = arith.maximumf %137, %138 : vector<4x128xf32>
    %c0_133 = arith.constant 0 : index
    %c4_134 = arith.constant 4 : index
    %c0_135 = arith.constant 0 : index
    %140 = vector.load %arg11[%c0_133, %c4_134, %c0_135] : memref<1x16x128xf32, #tpu.memory_space<vmem>>, vector<1x4x128xf32>
    %141 = vector.shape_cast %140 : vector<1x4x128xf32> to vector<4x128xf32>
    %142 = vector.shape_cast %139 : vector<4x128xf32> to vector<1x4x128xf32>
    tpu.vector_store %arg11[%c0_133, %c4_134, %c0_135], %142 {strides = array<i32>} : memref<1x16x128xf32, #tpu.memory_space<vmem>>, vector<1x4x128xf32>,
    %143 = vector.extract_strided_slice %126 {offsets = [12, 0], sizes = [4, 128], strides = [1, 1]} : vector<22x128xf32> to vector<4x128xf32>
    %144 = vector.extract_strided_slice %67 {offsets = [10, 0], sizes = [4, 128], strides = [1, 1]} : vector<19x128xf32> to vector<4x128xf32>
    %145 = arith.addf %143, %144 : vector<4x128xf32>
    %cst_136 = arith.constant 0.000000e+00 : f32
    %146 = vector.broadcast %cst_136 : f32 to vector<4x128xf32>
    %147 = arith.maximumf %145, %146 : vector<4x128xf32>
    %c0_137 = arith.constant 0 : index
    %c8_138 = arith.constant 8 : index
    %c0_139 = arith.constant 0 : index
    %148 = vector.load %arg11[%c0_137, %c8_138, %c0_139] : memref<1x16x128xf32, #tpu.memory_space<vmem>>, vector<1x4x128xf32>
    %149 = vector.shape_cast %148 : vector<1x4x128xf32> to vector<4x128xf32>
    %150 = vector.shape_cast %147 : vector<4x128xf32> to vector<1x4x128xf32>
    tpu.vector_store %arg11[%c0_137, %c8_138, %c0_139], %150 {strides = array<i32>} : memref<1x16x128xf32, #tpu.memory_space<vmem>>, vector<1x4x128xf32>,
    %151 = vector.extract_strided_slice %126 {offsets = [18, 0], sizes = [4, 128], strides = [1, 1]} : vector<22x128xf32> to vector<4x128xf32>
    %152 = vector.extract_strided_slice %67 {offsets = [15, 0], sizes = [4, 128], strides = [1, 1]} : vector<19x128xf32> to vector<4x128xf32>
    %153 = arith.addf %151, %152 : vector<4x128xf32>
    %cst_140 = arith.constant 0.000000e+00 : f32
    %154 = vector.broadcast %cst_140 : f32 to vector<4x128xf32>
    %155 = arith.maximumf %153, %154 : vector<4x128xf32>
    %c0_141 = arith.constant 0 : index
    %c12_142 = arith.constant 12 : index
    %c0_143 = arith.constant 0 : index
    %156 = vector.load %arg11[%c0_141, %c12_142, %c0_143] : memref<1x16x128xf32, #tpu.memory_space<vmem>>, vector<1x4x128xf32>
    %157 = vector.shape_cast %156 : vector<1x4x128xf32> to vector<4x128xf32>
    %158 = vector.shape_cast %155 : vector<4x128xf32> to vector<1x4x128xf32>
    tpu.vector_store %arg11[%c0_141, %c12_142, %c0_143], %158 {strides = array<i32>} : memref<1x16x128xf32, #tpu.memory_space<vmem>>, vector<1x4x128xf32>,
    return
  }
  func.func @transform_0(%arg0: i32) -> (i32, i32, i32) {
    %c0_i32 = arith.constant 0 : i32
    %c0_i32_0 = arith.constant 0 : i32
    %c0_i32_1 = arith.constant 0 : i32
    return %arg0, %c0_i32, %c0_i32_0 : i32, i32, i32
  }
  func.func @transform_1(%arg0: i32) -> (i32, i32, i32) {
    %c0_i32 = arith.constant 0 : i32
    %c0_i32_0 = arith.constant 0 : i32
    %c0_i32_1 = arith.constant 0 : i32
    return %arg0, %c0_i32, %c0_i32_0 : i32, i32, i32
  }
  func.func @transform_2(%arg0: i32) -> (i32, i32, i32) {
    %c0_i32 = arith.constant 0 : i32
    %c0_i32_0 = arith.constant 0 : i32
    %c0_i32_1 = arith.constant 0 : i32
    return %arg0, %c0_i32, %c0_i32_0 : i32, i32, i32
  }
  func.func @transform_3(%arg0: i32) -> (i32, i32, i32) {
    %c0_i32 = arith.constant 0 : i32
    %c0_i32_0 = arith.constant 0 : i32
    %c0_i32_1 = arith.constant 0 : i32
    return %arg0, %c0_i32, %c0_i32_0 : i32, i32, i32
  }
  func.func @transform_4(%arg0: i32) -> (i32, i32, i32) {
    %c0_i32 = arith.constant 0 : i32
    %c0_i32_0 = arith.constant 0 : i32
    %c0_i32_1 = arith.constant 0 : i32
    %c0_i32_2 = arith.constant 0 : i32
    return %c0_i32, %c0_i32_0, %c0_i32_1 : i32, i32, i32
  }
  func.func @transform_5(%arg0: i32) -> (i32, i32) {
    %c0_i32 = arith.constant 0 : i32
    %c0_i32_0 = arith.constant 0 : i32
    %c0_i32_1 = arith.constant 0 : i32
    return %c0_i32, %c0_i32_0 : i32, i32
  }
  func.func @transform_6(%arg0: i32) -> (i32, i32, i32) {
    %c0_i32 = arith.constant 0 : i32
    %c0_i32_0 = arith.constant 0 : i32
    %c0_i32_1 = arith.constant 0 : i32
    %c0_i32_2 = arith.constant 0 : i32
    return %c0_i32, %c0_i32_0, %c0_i32_1 : i32, i32, i32
  }
  func.func @transform_7(%arg0: i32) -> (i32, i32) {
    %c0_i32 = arith.constant 0 : i32
    %c0_i32_0 = arith.constant 0 : i32
    %c0_i32_1 = arith.constant 0 : i32
    return %c0_i32, %c0_i32_0 : i32, i32
  }
  func.func @transform_8(%arg0: i32) -> (i32, i32) {
    %c0_i32 = arith.constant 0 : i32
    %c0_i32_0 = arith.constant 0 : i32
    %c0_i32_1 = arith.constant 0 : i32
    return %c0_i32, %c0_i32_0 : i32, i32
  }
  func.func @transform_9(%arg0: i32) -> (i32, i32) {
    %c0_i32 = arith.constant 0 : i32
    %c0_i32_0 = arith.constant 0 : i32
    %c0_i32_1 = arith.constant 0 : i32
    return %c0_i32, %c0_i32_0 : i32, i32
  }
  func.func @transform_10(%arg0: i32) -> (i32, i32, i32) {
    %c0_i32 = arith.constant 0 : i32
    %c0_i32_0 = arith.constant 0 : i32
    %c0_i32_1 = arith.constant 0 : i32
    return %arg0, %c0_i32, %c0_i32_0 : i32, i32, i32
  }
}

</mosaic_0001>

<llo_original>
// kernel: basic_block_forward.1
$region0: #{basic_block_forward.1}
  #allocation0 [shape = 'u32[]', space=smem, size = 0x4, offset = 0x4, fixed_abs, tag = 'smem constant byte address 0x4 - core index']
  #allocation1 [shape = 'u32[144,128]{1,0:T(1,128)}', space=vmem, size = 0x12000, scoped, tag = 'internal scratch']
  #allocation2 [shape = 'bf16[36,128]{1,0:T(8,128)(2,1)}', space=vmem, size = 0x2800, scoped, tag = 'scratch operand']
  %s0 = inlined_call_operand.vmem [shape: bf16[2,25,64], index: 0, kind: input, shape index: {}]
  %s1 = inlined_call_operand.vmem [shape: bf16[2,25,64], index: 1, kind: input, shape index: {}]
  %s2 = inlined_call_operand.vmem [shape: bf16[2,25,64], index: 2, kind: input, shape index: {}]
  %s3 = inlined_call_operand.vmem [shape: bf16[2,25,64], index: 3, kind: input, shape index: {}]
  %s4 = inlined_call_operand.vmem [shape: bf16[9,64,128], index: 4, kind: input, shape index: {}]
  %s5 = inlined_call_operand.vmem [shape: f32[1,128], index: 5, kind: input, shape index: {}]
  %s6 = inlined_call_operand.vmem [shape: bf16[9,128,128], index: 6, kind: input, shape index: {}]
  %s7 = inlined_call_operand.vmem [shape: f32[1,128], index: 7, kind: input, shape index: {}]
  %s8 = inlined_call_operand.vmem [shape: bf16[64,128], index: 8, kind: input, shape index: {}]
  %s9 = inlined_call_operand.vmem [shape: f32[1,128], index: 9, kind: input, shape index: {}]
  %s10 = inlined_call_operand.hbm [shape: f32[2,16,128], index: 10, kind: output, shape index: {}]
  %s11 = sld [smem:[#allocation0]]
  $region73: #{basic_block_forward.1} parent=0
    _
  %s13 = ssub.s32 1, %s11
  %s14 = scalar_select 0, %s13, %s11
  $region1: #{basic_block_forward.1} parent=0
    #allocation3 [shape = 'u8[16384]{0}', space=vmem, size = 0x4000, scoped, tag = 'output window, operand 0']
    #allocation4 [shape = 's32[2]{0}', space=sflag, size = 0x8, scoped, tag = 'scoped memory for basic_block_forward.1']
    %15 = vsyncpa [#allocation4], 0
    %s16 = scalar_lea.sflag [#allocation4], 1
    %17 = vsyncpa %s16, 0
    loop: start=0, step=1, limit=4
    $region2: #{basic_block_forward.1} parent=1 // loop_pre_header
      _
    $region3: #{basic_block_forward.1} parent=1 // loop_header
      %s19 = sphi 0, %s23
      %p20 = scmp.ge.s32.totalorder %s19, 4
      %s29 = sphi 0, %s31
      %s32 = sphi 0, %s29
      %s33 = sphi 0, %s32
      %s49 = sphi 0, %s33
      %s55 = sphi 0, %s57
      %s58 = sphi 0, %s55
      %s59 = sphi 0, %s58
      %s75 = sphi 0, %s59
      %s81 = sphi 0, %s83
      %s84 = sphi 0, %s81
      %s85 = sphi 0, %s84
      %s101 = sphi 0, %s85
      %s107 = sphi 0, %s109
      %s110 = sphi 0, %s107
      %s111 = sphi 0, %s110
      %s127 = sphi 0, %s111
      %s131 = sphi 0, %s131
      %s133 = sphi 0, %s131
      %s134 = sphi 0, %s133
      %s148 = sphi 0, %s134
      %s152 = sphi 0, %s152
      %s154 = sphi 0, %s152
      %s155 = sphi 0, %s154
      %s169 = sphi 0, %s155
      %s173 = sphi 0, %s173
      %s175 = sphi 0, %s173
      %s176 = sphi 0, %s175
      %s190 = sphi 0, %s176
      %s194 = sphi 0, %s194
      %s196 = sphi 0, %s194
      %s197 = sphi 0, %s196
      %s211 = sphi 0, %s197
      %s215 = sphi 0, %s215
      %s217 = sphi 0, %s215
      %s218 = sphi 0, %s217
      %s232 = sphi 0, %s218
      %s236 = sphi 0, %s236
      %s238 = sphi 0, %s236
      %s239 = sphi 0, %s238
      %s253 = sphi 0, %s239
      %s259 = sphi 0, %s261
      %s262 = sphi 0, %s259
      %s263 = sphi 0, %s262
      %s279 = sphi 0, %s263
    $region4: #{basic_block_forward.1} parent=1 // loop_header_branch
      %22 = sbr.rel (%p20) target = $region8
    $region5: #{basic_block_forward.1} parent=1 // loop_body
      %s24 = ssub.s32 %s19, 1
      %s25 = ssub.s32 %s19, 2
      %s26 = sadd.s32 %s19, 1
      %s27 = ssub.s32 %s19, %s26
      %p28 = scmp.eq.s32.totalorder %s27, 0
      %s30 = sadd.s32 %s29, 1
      %s31 = scalar_select %p28, %s29, %s30
      %p34 = pneg %p28
      %p35 = scmp.eq.s32.totalorder %s19, 1
      %p36 = por %p34, %p35
      %p37 = scmp.ne.s32.totalorder %s29, %s32
      %p38 = scmp.eq.s32.totalorder %s19, 0
      %p39 = por %p37, %p38
      %p40 = scmp.ne.s32.totalorder %s29, %s32
      %p41 = scmp.eq.s32.totalorder %s24, 1
      %p42 = por %p40, %p41
      %p43 = scmp.ne.s32.totalorder %s32, %s33
      %p44 = scmp.eq.s32.totalorder %s24, 0
      %p45 = por %p43, %p44
      %p46 = scmp.ne.s32.totalorder %s32, %s33
      %p47 = scmp.eq.s32.totalorder %s25, 1
      %p48 = por %p46, %p47
      %p50 = scmp.ne.s32.totalorder %s33, %s49
      %p51 = scmp.eq.s32.totalorder %s25, 0
      %p52 = por %p50, %p51
      %s53 = ssub.s32 %s19, %s26
      %p54 = scmp.eq.s32.totalorder %s53, 0
      %s56 = sadd.s32 %s55, 1
      %s57 = scalar_select %p54, %s55, %s56
      %p60 = pneg %p54
      %p61 = scmp.eq.s32.totalorder %s19, 1
      %p62 = por %p60, %p61
      %p63 = scmp.ne.s32.totalorder %s55, %s58
      %p64 = scmp.eq.s32.totalorder %s19, 0
      %p65 = por %p63, %p64
      %p66 = scmp.ne.s32.totalorder %s55, %s58
      %p67 = scmp.eq.s32.totalorder %s24, 1
      %p68 = por %p66, %p67
      %p69 = scmp.ne.s32.totalorder %s58, %s59
      %p70 = scmp.eq.s32.totalorder %s24, 0
      %p71 = por %p69, %p70
      %p72 = scmp.ne.s32.totalorder %s58, %s59
      %p73 = scmp.eq.s32.totalorder %s25, 1
      %p74 = por %p72, %p73
      %p76 = scmp.ne.s32.totalorder %s59, %s75
      %p77 = scmp.eq.s32.totalorder %s25, 0
      %p78 = por %p76, %p77
      %s79 = ssub.s32 %s19, %s26
      %p80 = scmp.eq.s32.totalorder %s79, 0
      %s82 = sadd.s32 %s81, 1
      %s83 = scalar_select %p80, %s81, %s82
      %p86 = pneg %p80
      %p87 = scmp.eq.s32.totalorder %s19, 1
      %p88 = por %p86, %p87
      %p89 = scmp.ne.s32.totalorder %s81, %s84
      %p90 = scmp.eq.s32.totalorder %s19, 0
      %p91 = por %p89, %p90
      %p92 = scmp.ne.s32.totalorder %s81, %s84
      %p93 = scmp.eq.s32.totalorder %s24, 1
      %p94 = por %p92, %p93
      %p95 = scmp.ne.s32.totalorder %s84, %s85
      %p96 = scmp.eq.s32.totalorder %s24, 0
      %p97 = por %p95, %p96
      %p98 = scmp.ne.s32.totalorder %s84, %s85
      %p99 = scmp.eq.s32.totalorder %s25, 1
      %p100 = por %p98, %p99
      %p102 = scmp.ne.s32.totalorder %s85, %s101
      %p103 = scmp.eq.s32.totalorder %s25, 0
      %p104 = por %p102, %p103
      %s105 = ssub.s32 %s19, %s26
      %p106 = scmp.eq.s32.totalorder %s105, 0
      %s108 = sadd.s32 %s107, 1
      %s109 = scalar_select %p106, %s107, %s108
      %p112 = pneg %p106
      %p113 = scmp.eq.s32.totalorder %s19, 1
      %p114 = por %p112, %p113
      %p115 = scmp.ne.s32.totalorder %s107, %s110
      %p116 = scmp.eq.s32.totalorder %s19, 0
      %p117 = por %p115, %p116
      %p118 = scmp.ne.s32.totalorder %s107, %s110
      %p119 = scmp.eq.s32.totalorder %s24, 1
      %p120 = por %p118, %p119
      %p121 = scmp.ne.s32.totalorder %s110, %s111
      %p122 = scmp.eq.s32.totalorder %s24, 0
      %p123 = por %p121, %p122
      %p124 = scmp.ne.s32.totalorder %s110, %s111
      %p125 = scmp.eq.s32.totalorder %s25, 1
      %p126 = por %p124, %p125
      %p128 = scmp.ne.s32.totalorder %s111, %s127
      %p129 = scmp.eq.s32.totalorder %s25, 0
      %p130 = por %p128, %p129
      %s132 = sadd.s32 %s131, 1
      %p135 = scmp.eq.s32.totalorder %s19, 1
      %p136 = scmp.ne.s32.totalorder %s131, %s133
      %p137 = scmp.eq.s32.totalorder %s19, 0
      %p138 = por %p136, %p137
      %p139 = scmp.ne.s32.totalorder %s131, %s133
      %p140 = scmp.eq.s32.totalorder %s24, 1
      %p141 = por %p139, %p140
      %p142 = scmp.ne.s32.totalorder %s133, %s134
      %p143 = scmp.eq.s32.totalorder %s24, 0
      %p144 = por %p142, %p143
      %p145 = scmp.ne.s32.totalorder %s133, %s134
      %p146 = scmp.eq.s32.totalorder %s25, 1
      %p147 = por %p145, %p146
      %p149 = scmp.ne.s32.totalorder %s134, %s148
      %p150 = scmp.eq.s32.totalorder %s25, 0
      %p151 = por %p149, %p150
      %s153 = sadd.s32 %s152, 1
      %p156 = scmp.eq.s32.totalorder %s19, 1
      %p157 = scmp.ne.s32.totalorder %s152, %s154
      %p158 = scmp.eq.s32.totalorder %s19, 0
      %p159 = por %p157, %p158
      %p160 = scmp.ne.s32.totalorder %s152, %s154
      %p161 = scmp.eq.s32.totalorder %s24, 1
      %p162 = por %p160, %p161
      %p163 = scmp.ne.s32.totalorder %s154, %s155
      %p164 = scmp.eq.s32.totalorder %s24, 0
      %p165 = por %p163, %p164
      %p166 = scmp.ne.s32.totalorder %s154, %s155
      %p167 = scmp.eq.s32.totalorder %s25, 1
      %p168 = por %p166, %p167
      %p170 = scmp.ne.s32.totalorder %s155, %s169
      %p171 = scmp.eq.s32.totalorder %s25, 0
      %p172 = por %p170, %p171
      %s174 = sadd.s32 %s173, 1
      %p177 = scmp.eq.s32.totalorder %s19, 1
      %p178 = scmp.ne.s32.totalorder %s173, %s175
      %p179 = scmp.eq.s32.totalorder %s19, 0
      %p180 = por %p178, %p179
      %p181 = scmp.ne.s32.totalorder %s173, %s175
      %p182 = scmp.eq.s32.totalorder %s24, 1
      %p183 = por %p181, %p182
      %p184 = scmp.ne.s32.totalorder %s175, %s176
      %p185 = scmp.eq.s32.totalorder %s24, 0
      %p186 = por %p184, %p185
      %p187 = scmp.ne.s32.totalorder %s175, %s176
      %p188 = scmp.eq.s32.totalorder %s25, 1
      %p189 = por %p187, %p188
      %p191 = scmp.ne.s32.totalorder %s176, %s190
      %p192 = scmp.eq.s32.totalorder %s25, 0
      %p193 = por %p191, %p192
      %s195 = sadd.s32 %s194, 1
      %p198 = scmp.eq.s32.totalorder %s19, 1
      %p199 = scmp.ne.s32.totalorder %s194, %s196
      %p200 = scmp.eq.s32.totalorder %s19, 0
      %p201 = por %p199, %p200
      %p202 = scmp.ne.s32.totalorder %s194, %s196
      %p203 = scmp.eq.s32.totalorder %s24, 1
      %p204 = por %p202, %p203
      %p205 = scmp.ne.s32.totalorder %s196, %s197
      %p206 = scmp.eq.s32.totalorder %s24, 0
      %p207 = por %p205, %p206
      %p208 = scmp.ne.s32.totalorder %s196, %s197
      %p209 = scmp.eq.s32.totalorder %s25, 1
      %p210 = por %p208, %p209
      %p212 = scmp.ne.s32.totalorder %s197, %s211
      %p213 = scmp.eq.s32.totalorder %s25, 0
      %p214 = por %p212, %p213
      %s216 = sadd.s32 %s215, 1
      %p219 = scmp.eq.s32.totalorder %s19, 1
      %p220 = scmp.ne.s32.totalorder %s215, %s217
      %p221 = scmp.eq.s32.totalorder %s19, 0
      %p222 = por %p220, %p221
      %p223 = scmp.ne.s32.totalorder %s215, %s217
      %p224 = scmp.eq.s32.totalorder %s24, 1
      %p225 = por %p223, %p224
      %p226 = scmp.ne.s32.totalorder %s217, %s218
      %p227 = scmp.eq.s32.totalorder %s24, 0
      %p228 = por %p226, %p227
      %p229 = scmp.ne.s32.totalorder %s217, %s218
      %p230 = scmp.eq.s32.totalorder %s25, 1
      %p231 = por %p229, %p230
      %p233 = scmp.ne.s32.totalorder %s218, %s232
      %p234 = scmp.eq.s32.totalorder %s25, 0
      %p235 = por %p233, %p234
      %s237 = sadd.s32 %s236, 1
      %p240 = scmp.eq.s32.totalorder %s19, 1
      %p241 = scmp.ne.s32.totalorder %s236, %s238
      %p242 = scmp.eq.s32.totalorder %s19, 0
      %p243 = por %p241, %p242
      %p244 = scmp.ne.s32.totalorder %s236, %s238
      %p245 = scmp.eq.s32.totalorder %s24, 1
      %p246 = por %p244, %p245
      %p247 = scmp.ne.s32.totalorder %s238, %s239
      %p248 = scmp.eq.s32.totalorder %s24, 0
      %p249 = por %p247, %p248
      %p250 = scmp.ne.s32.totalorder %s238, %s239
      %p251 = scmp.eq.s32.totalorder %s25, 1
      %p252 = por %p250, %p251
      %p254 = scmp.ne.s32.totalorder %s239, %s253
      %p255 = scmp.eq.s32.totalorder %s25, 0
      %p256 = por %p254, %p255
      %s257 = ssub.s32 %s19, %s26
      %p258 = scmp.eq.s32.totalorder %s257, 0
      %s260 = sadd.s32 %s259, 1
      %s261 = scalar_select %p258, %s259, %s260
      %p264 = pneg %p258
      %p265 = scmp.eq.s32.totalorder %s19, 1
      %p266 = por %p264, %p265
      %p267 = scmp.ne.s32.totalorder %s259, %s262
      %p268 = scmp.eq.s32.totalorder %s19, 0
      %p269 = por %p267, %p268
      %p270 = scmp.ne.s32.totalorder %s259, %s262
      %p271 = scmp.eq.s32.totalorder %s24, 1
      %p272 = por %p270, %p271
      %p273 = scmp.ne.s32.totalorder %s262, %s263
      %p274 = scmp.eq.s32.totalorder %s24, 0
      %p275 = por %p273, %p274
      %p276 = scmp.ne.s32.totalorder %s262, %s263
      %p277 = scmp.eq.s32.totalorder %s25, 1
      %p278 = por %p276, %p277
      %p280 = scmp.ne.s32.totalorder %s263, %s279
      %p281 = scmp.eq.s32.totalorder %s25, 0
      %p282 = por %p280, %p281
      %p283 = scmp.le.s32.totalorder 1, %s19
      %p284 = scmp.lt.s32.totalorder %s19, 3
      %p285 = pnand %p283, %p284
      %p286 = pneg %p285
      // Predicated region
      $region9: #{basic_block_forward.1} parent=5 // pred_check
        _
      $region10: #{basic_block_forward.1} parent=5 // pred_check_branch
        %288 = sbr.rel (%p285) target = $region12
      $region11: #{basic_block_forward.1} parent=5 // pred_region
        %s289 = ssub.s32 %s19, 1
        // Predicated region
        $region13: #{basic_block_forward.1} parent=11 // pred_check
          %p290 = pneg %p144
        $region14: #{basic_block_forward.1} parent=11 // pred_check_branch
          %292 = sbr.rel (%p290) target = $region16
        $region15: #{basic_block_forward.1} parent=11 // pred_region
          _
        $region16: #{basic_block_forward.1} parent=11 // pred_fallthru
          _
        // Predicated region
        $region17: #{basic_block_forward.1} parent=11 // pred_check
          %p293 = pneg %p165
        $region18: #{basic_block_forward.1} parent=11 // pred_check_branch
          %295 = sbr.rel (%p293) target = $region20
        $region19: #{basic_block_forward.1} parent=11 // pred_region
          _
        $region20: #{basic_block_forward.1} parent=11 // pred_fallthru
          _
        // Predicated region
        $region21: #{basic_block_forward.1} parent=11 // pred_check
          %p296 = pneg %p186
        $region22: #{basic_block_forward.1} parent=11 // pred_check_branch
          %298 = sbr.rel (%p296) target = $region24
        $region23: #{basic_block_forward.1} parent=11 // pred_region
          _
        $region24: #{basic_block_forward.1} parent=11 // pred_fallthru
          _
        // Predicated region
        $region25: #{basic_block_forward.1} parent=11 // pred_check
          %p299 = pneg %p207
        $region26: #{basic_block_forward.1} parent=11 // pred_check_branch
          %301 = sbr.rel (%p299) target = $region28
        $region27: #{basic_block_forward.1} parent=11 // pred_region
          _
        $region28: #{basic_block_forward.1} parent=11 // pred_fallthru
          _
        // Predicated region
        $region29: #{basic_block_forward.1} parent=11 // pred_check
          %p302 = pneg %p228
        $region30: #{basic_block_forward.1} parent=11 // pred_check_branch
          %304 = sbr.rel (%p302) target = $region32
        $region31: #{basic_block_forward.1} parent=11 // pred_region
          _
        $region32: #{basic_block_forward.1} parent=11 // pred_fallthru
          _
        // Predicated region
        $region33: #{basic_block_forward.1} parent=11 // pred_check
          %p305 = pneg %p249
        $region34: #{basic_block_forward.1} parent=11 // pred_check_branch
          %307 = sbr.rel (%p305) target = $region36
        $region35: #{basic_block_forward.1} parent=11 // pred_region
          _
        $region36: #{basic_block_forward.1} parent=11 // pred_fallthru
          _
      $region12: #{basic_block_forward.1} parent=5 // pred_fallthru
        _
      %p308 = scmp.lt.s32.totalorder %s19, 2
      // Predicated region
      $region37: #{basic_block_forward.1} parent=5 // pred_check
        %p309 = pneg %p308
      $region38: #{basic_block_forward.1} parent=5 // pred_check_branch
        %311 = sbr.rel (%p309) target = $region40
      $region39: #{basic_block_forward.1} parent=5 // pred_region
        // Predicated region
        $region41: #{basic_block_forward.1} parent=39 // pred_check
          %p312 = pneg %p39
        $region42: #{basic_block_forward.1} parent=39 // pred_check_branch
          %314 = sbr.rel (%p312) target = $region44
        $region43: #{basic_block_forward.1} parent=39 // pred_region
          %p315 = scmp.lt.s32.totalorder %s19, 1
          %s316 = scalar_select %p315, %s19, 1
          %s317 = smul.addr %s316, 4
          %s318 = smul.addr %s317, 4
          %s319 = scalar_lea.vmem %s0, %s318
        $region44: #{basic_block_forward.1} parent=39 // pred_fallthru
          _
        // Predicated region
        $region45: #{basic_block_forward.1} parent=39 // pred_check
          %p320 = pneg %p65
        $region46: #{basic_block_forward.1} parent=39 // pred_check_branch
          %322 = sbr.rel (%p320) target = $region48
        $region47: #{basic_block_forward.1} parent=39 // pred_region
          %p323 = scmp.lt.s32.totalorder %s19, 1
          %s324 = scalar_select %p323, %s19, 1
          %s325 = smul.addr %s324, 4
          %s326 = smul.addr %s325, 4
          %s327 = scalar_lea.vmem %s1, %s326
        $region48: #{basic_block_forward.1} parent=39 // pred_fallthru
          _
        // Predicated region
        $region49: #{basic_block_forward.1} parent=39 // pred_check
          %p328 = pneg %p91
        $region50: #{basic_block_forward.1} parent=39 // pred_check_branch
          %330 = sbr.rel (%p328) target = $region52
        $region51: #{basic_block_forward.1} parent=39 // pred_region
          %p331 = scmp.lt.s32.totalorder %s19, 1
          %s332 = scalar_select %p331, %s19, 1
          %s333 = smul.addr %s332, 4
          %s334 = smul.addr %s333, 4
          %s335 = scalar_lea.vmem %s2, %s334
        $region52: #{basic_block_forward.1} parent=39 // pred_fallthru
          _
        // Predicated region
        $region53: #{basic_block_forward.1} parent=39 // pred_check
          %p336 = pneg %p117
        $region54: #{basic_block_forward.1} parent=39 // pred_check_branch
          %338 = sbr.rel (%p336) target = $region56
        $region55: #{basic_block_forward.1} parent=39 // pred_region
          %p339 = scmp.lt.s32.totalorder %s19, 1
          %s340 = scalar_select %p339, %s19, 1
          %s341 = smul.addr %s340, 4
          %s342 = smul.addr %s341, 4
          %s343 = scalar_lea.vmem %s3, %s342
        $region56: #{basic_block_forward.1} parent=39 // pred_fallthru
          _
      $region40: #{basic_block_forward.1} parent=5 // pred_fallthru
        _
      %p344 = scmp.le.s32.totalorder 1, %s19
      %p345 = scmp.lt.s32.totalorder %s19, 3
      %p346 = pnand %p344, %p345
      %p347 = pneg %p346
      // Predicated region
      $region57: #{basic_block_forward.1} parent=5 // pred_check
        _
      $region58: #{basic_block_forward.1} parent=5 // pred_check_branch
        %349 = sbr.rel (%p346) target = $region60
      $region59: #{basic_block_forward.1} parent=5 // pred_region
        %s350 = ssub.s32 %s19, 1
        %p351 = scmp.lt.s32.totalorder %s24, 1
        %s352 = scalar_select %p351, %s24, 1
        %s353 = smul.addr %s352, 4
        %s354 = smul.addr %s353, 4
        %s355 = scalar_lea.vmem %s0, %s354
        %p356 = pneg %p45
        %p357 = pneg %p42
        %p358 = scmp.lt.s32.totalorder %s24, 1
        %s359 = scalar_select %p358, %s24, 1
        %s360 = smul.addr %s359, 4
        %s361 = smul.addr %s360, 4
        %s362 = scalar_lea.vmem %s1, %s361
        %p363 = pneg %p71
        %p364 = pneg %p68
        %p365 = scmp.lt.s32.totalorder %s24, 1
        %s366 = scalar_select %p365, %s24, 1
        %s367 = smul.addr %s366, 4
        %s368 = smul.addr %s367, 4
        %s369 = scalar_lea.vmem %s2, %s368
        %p370 = pneg %p97
        %p371 = pneg %p94
        %p372 = scmp.lt.s32.totalorder %s24, 1
        %s373 = scalar_select %p372, %s24, 1
        %s374 = smul.addr %s373, 4
        %s375 = smul.addr %s374, 4
        %s376 = scalar_lea.vmem %s3, %s375
        %p377 = pneg %p123
        %p378 = pneg %p120
        %p379 = pneg %p144
        %p380 = pneg %p141
        %p381 = pneg %p165
        %p382 = pneg %p162
        %p383 = pneg %p186
        %p384 = pneg %p183
        %p385 = pneg %p207
        %p386 = pneg %p204
        %p387 = pneg %p228
        %p388 = pneg %p225
        %p389 = pneg %p249
        %p390 = pneg %p246
        %p391 = pneg %p275
        %p392 = pneg %p272
        %s393 = sand.u32 %s262, 1
        %s394 = scalar_lea.sflag [#allocation4], %s393
        %s395 = sand.u32 %s262, 1
        %s396 = smul.addr %s395, 16
        %s397 = scalar_lea.vmem [#allocation3], %s396
        %p398 = scmp.lt.s32.totalorder %s24, 1
        %s399 = scalar_select %p398, %s24, 1
        %s400 = smul.addr %s399, 4
        %s401 = smul.addr %s400, 4
        %s402 = scalar_lea.vmem %s0, %s401
        %p403 = scmp.lt.s32.totalorder %s24, 1
        %s404 = scalar_select %p403, %s24, 1
        %s405 = smul.addr %s404, 4
        %s406 = smul.addr %s405, 4
        %s407 = scalar_lea.vmem %s1, %s406
        %p408 = scmp.lt.s32.totalorder %s24, 1
        %s409 = scalar_select %p408, %s24, 1
        %s410 = smul.addr %s409, 4
        %s411 = smul.addr %s410, 4
        %s412 = scalar_lea.vmem %s2, %s411
        %p413 = scmp.lt.s32.totalorder %s24, 1
        %s414 = scalar_select %p413, %s24, 1
        %s415 = smul.addr %s414, 4
        %s416 = smul.addr %s415, 4
        %s417 = scalar_lea.vmem %s3, %s416
        %v419 = vld [vmem:[%s402] sm:$0xf]
        %v420 = vld [vmem:[%s402 + $0x4] sm:$0xf]
        %v421 = vld [vmem:[%s402 + $0x8] sm:$0x3]
        %v422 = vld [vmem:[%s4] sm:$0xf]
        %v423 = vld [vmem:[%s4 + $0x4] sm:$0xf]
        %v424 = vld [vmem:[%s4 + $0x8] sm:$0xf]
        %v425 = vld [vmem:[%s4 + $0xc] sm:$0xf]
        %v426 = vld [vmem:[%s4 + $0x10] sm:$0xf]
        %v427 = vld [vmem:[%s4 + $0x14] sm:$0xf]
        %v428 = vld [vmem:[%s4 + $0x18] sm:$0xf]
        %v429 = vld [vmem:[%s4 + $0x1c] sm:$0xf]
        %v430 = vld [vmem:[%s407] sm:$0xf]
        %v431 = vld [vmem:[%s407 + $0x4] sm:$0xf]
        %v432 = vld [vmem:[%s407 + $0x8] sm:$0x3]
        %s433 = scalar_lea.vmem %s4, 32
        %v434 = vld [vmem:[%s433] sm:$0xf]
        %v435 = vld [vmem:[%s433 + $0x4] sm:$0xf]
        %v436 = vld [vmem:[%s433 + $0x8] sm:$0xf]
        %v437 = vld [vmem:[%s433 + $0xc] sm:$0xf]
        %v438 = vld [vmem:[%s433 + $0x10] sm:$0xf]
        %v439 = vld [vmem:[%s433 + $0x14] sm:$0xf]
        %v440 = vld [vmem:[%s433 + $0x18] sm:$0xf]
        %v441 = vld [vmem:[%s433 + $0x1c] sm:$0xf]
        %v445 = vunpack.c.l.b16 %v430
        %v446 = vunpack.c.l.b16 %v431
        %v447 = vunpack.c.l.b16 %v432
        %v448 = vpack.c.b16 %v446, %v445
        %v449 = vpack.c.b16 %v447, %v447
        %v458 = vunpack.c.l.b16 %v434
        %v459 = vunpack.c.l.b16 %v435
        %v460 = vunpack.c.l.b16 %v436
        %v461 = vunpack.c.l.b16 %v437
        %v462 = vunpack.c.l.b16 %v438
        %v463 = vunpack.c.l.b16 %v439
        %v464 = vunpack.c.l.b16 %v440
        %v465 = vunpack.c.l.b16 %v441
        %v466 = vpack.c.b16 %v459, %v458
        %v467 = vpack.c.b16 %v461, %v460
        %v468 = vpack.c.b16 %v463, %v462
        %v469 = vpack.c.b16 %v465, %v464
        %vm474 = vcmask 523264
        %v476 = vsel %vm474, %v448, 0
        %v479 = vsel %vm474, %v449, 0
        %481 = vmatprep.subr.bf16.mxu0 0
        %482 = vmatpush1.bf16.msra.mxu0 0
        %483 = vmatprep.subr.bf16.mxu0 0
        %484 = vmatpush1.bf16.msra.mxu0 0
        %485 = vmatprep.subr.bf16.mxu0 0
        %486 = vmatpush1.bf16.msra.mxu0 0
        %487 = vmatprep.subr.bf16.mxu0 0
        %488 = vmatpush1.bf16.msra.mxu0 0
        %489 = vmatprep.subr.bf16.mxu0 0
        %490 = vmatpush1.bf16.msra.mxu0 %v469
        %491 = vmatprep.subr.bf16.mxu0 0
        %492 = vmatpush1.bf16.msra.mxu0 %v468
        %493 = vmatprep.subr.bf16.mxu0 0
        %494 = vmatpush1.bf16.msra.mxu0 %v467
        %495 = vmatprep.subr.bf16.mxu0 0
        %496 = vmatpush1.bf16.msra.mxu0 %v466
        %497 = vmatprep.subr.bf16.mxu0 0
        %498 = vmatpush2.bf16.msra.mxu0 0
        %499 = vmatprep.subr.bf16.mxu0 0
        %500 = vmatpush2.bf16.msra.mxu0 0
        %501 = vmatprep.subr.bf16.mxu0 0
        %502 = vmatpush2.bf16.msra.mxu0 0
        %503 = vmatprep.subr.bf16.mxu0 0
        %504 = vmatpush2.bf16.msra.mxu0 0
        %505 = vmatprep.subr.bf16.mxu0 0
        %506 = vmatpush2.bf16.msra.mxu0 0
        %507 = vmatprep.subr.bf16.mxu0 0
        %508 = vmatpush2.bf16.msra.mxu0 0
        %509 = vmatprep.subr.bf16.mxu0 0
        %510 = vmatpush2.bf16.msra.mxu0 0
        %511 = vmatprep.subr.bf16.mxu0 0
        %512 = vmatpush2.bf16.msra.mxu0 0
        %513 = vmatprep.mubr.bf16.mxu0 0
        %514 = vmatmul.mubr.bf16.gmra.mxu0 %v476
        %v515 = vpop.f32.mrf.mxu0
        %v516 = vadd.f32 0.0, %v515
        %v517 = vpop.f32.mrf.mxu0
        %v518 = vpop.f32.mrf.mxu0
        %v519 = vadd.f32 0.0, %v518
        %v520 = vpop.f32.mrf.mxu0
        %521 = vmatprep.mubr.bf16.mxu0 0
        %522 = vmatmul.mubr.bf16.gmra.mxu0 %v479
        %v523 = vpop.f32.mrf.mxu0
        %v524 = vadd.f32 0.0, %v523
        %v525 = vpop.f32.mrf.mxu0
        %v526 = vpop.f32.mrf.mxu0
        %v527 = vpop.f32.mrf.mxu0
        %528 = vdwg.mxu0
        %v532 = vunpack.c.l.b16 %v419
        %v533 = vunpack.c.l.b16 %v420
        %v534 = vunpack.c.l.b16 %v421
        %v535 = vpack.c.b16 %v533, %v532
        %v536 = vpack.c.b16 %v534, %v534
        %v545 = vunpack.c.l.b16 %v422
        %v546 = vunpack.c.l.b16 %v423
        %v547 = vunpack.c.l.b16 %v424
        %v548 = vunpack.c.l.b16 %v425
        %v549 = vunpack.c.l.b16 %v426
        %v550 = vunpack.c.l.b16 %v427
        %v551 = vunpack.c.l.b16 %v428
        %v552 = vunpack.c.l.b16 %v429
        %v553 = vpack.c.b16 %v546, %v545
        %v554 = vpack.c.b16 %v548, %v547
        %v555 = vpack.c.b16 %v550, %v549
        %v556 = vpack.c.b16 %v552, %v551
        %v562 = vsel %vm474, %v535, 0
        %v565 = vsel %vm474, %v536, 0
        %567 = vmatprep.subr.bf16.mxu0 0
        %568 = vmatpush1.bf16.msra.mxu0 0
        %569 = vmatprep.subr.bf16.mxu0 0
        %570 = vmatpush1.bf16.msra.mxu0 0
        %571 = vmatprep.subr.bf16.mxu0 0
        %572 = vmatpush1.bf16.msra.mxu0 0
        %573 = vmatprep.subr.bf16.mxu0 0
        %574 = vmatpush1.bf16.msra.mxu0 0
        %575 = vmatprep.subr.bf16.mxu0 0
        %576 = vmatpush1.bf16.msra.mxu0 %v556
        %577 = vmatprep.subr.bf16.mxu0 0
        %578 = vmatpush1.bf16.msra.mxu0 %v555
        %579 = vmatprep.subr.bf16.mxu0 0
        %580 = vmatpush1.bf16.msra.mxu0 %v554
        %581 = vmatprep.subr.bf16.mxu0 0
        %582 = vmatpush1.bf16.msra.mxu0 %v553
        %583 = vmatprep.subr.bf16.mxu0 0
        %584 = vmatpush2.bf16.msra.mxu0 0
        %585 = vmatprep.subr.bf16.mxu0 0
        %586 = vmatpush2.bf16.msra.mxu0 0
        %587 = vmatprep.subr.bf16.mxu0 0
        %588 = vmatpush2.bf16.msra.mxu0 0
        %589 = vmatprep.subr.bf16.mxu0 0
        %590 = vmatpush2.bf16.msra.mxu0 0
        %591 = vmatprep.subr.bf16.mxu0 0
        %592 = vmatpush2.bf16.msra.mxu0 0
        %593 = vmatprep.subr.bf16.mxu0 0
        %594 = vmatpush2.bf16.msra.mxu0 0
        %595 = vmatprep.subr.bf16.mxu0 0
        %596 = vmatpush2.bf16.msra.mxu0 0
        %597 = vmatprep.subr.bf16.mxu0 0
        %598 = vmatpush2.bf16.msra.mxu0 0
        %599 = vmatprep.mubr.bf16.mxu0 0
        %600 = vmatmul.mubr.bf16.gmra.mxu0 %v562
        %v601 = vpop.f32.mrf.mxu0
        %v602 = vadd.f32 %v516, %v601
        %v603 = vpop.f32.mrf.mxu0
        %v604 = vpop.f32.mrf.mxu0
        %v605 = vadd.f32 %v519, %v604
        %v606 = vpop.f32.mrf.mxu0
        %607 = vmatprep.mubr.bf16.mxu0 0
        %608 = vmatmul.mubr.bf16.gmra.mxu0 %v565
        %v609 = vpop.f32.mrf.mxu0
        %v610 = vadd.f32 %v524, %v609
        %v611 = vpop.f32.mrf.mxu0
        %v612 = vpop.f32.mrf.mxu0
        %v613 = vpop.f32.mrf.mxu0
        %614 = vdwg.mxu0
        %s615 = scalar_lea.vmem %s4, 64
        %v616 = vld [vmem:[%s615] sm:$0xf]
        %v617 = vld [vmem:[%s615 + $0x4] sm:$0xf]
        %v618 = vld [vmem:[%s615 + $0x8] sm:$0xf]
        %v619 = vld [vmem:[%s615 + $0xc] sm:$0xf]
        %v620 = vld [vmem:[%s615 + $0x10] sm:$0xf]
        %v621 = vld [vmem:[%s615 + $0x14] sm:$0xf]
        %v622 = vld [vmem:[%s615 + $0x18] sm:$0xf]
        %v623 = vld [vmem:[%s615 + $0x1c] sm:$0xf]
        %vm624 = vsmask.f32 7424
        %v625 = vshrl.u32 %v535, 16
        %v627 = vshll.u32 %v535, 16
        %v629 = vrot.slane %v627, 1
        %v630 = vor.u32 %v625, %v629
        %v631 = vshll.u32 %v536, 16
        %v633 = vrot.slane %v631, 1
        %v634 = vsel %vm624, %v630, %v633
        %v635 = vshrl.u32 %v536, 16
        %v637 = vor.u32 %v635, %v633
        %v646 = vunpack.c.l.b16 %v616
        %v647 = vunpack.c.l.b16 %v617
        %v648 = vunpack.c.l.b16 %v618
        %v649 = vunpack.c.l.b16 %v619
        %v650 = vunpack.c.l.b16 %v620
        %v651 = vunpack.c.l.b16 %v621
        %v652 = vunpack.c.l.b16 %v622
        %v653 = vunpack.c.l.b16 %v623
        %v654 = vpack.c.b16 %v647, %v646
        %v655 = vpack.c.b16 %v649, %v648
        %v656 = vpack.c.b16 %v651, %v650
        %v657 = vpack.c.b16 %v653, %v652
        %v663 = vsel %vm474, %v634, 0
        %v666 = vsel %vm474, %v637, 0
        %668 = vmatprep.subr.bf16.mxu0 0
        %669 = vmatpush1.bf16.msra.mxu0 0
        %670 = vmatprep.subr.bf16.mxu0 0
        %671 = vmatpush1.bf16.msra.mxu0 0
        %672 = vmatprep.subr.bf16.mxu0 0
        %673 = vmatpush1.bf16.msra.mxu0 0
        %674 = vmatprep.subr.bf16.mxu0 0
        %675 = vmatpush1.bf16.msra.mxu0 0
        %676 = vmatprep.subr.bf16.mxu0 0
        %677 = vmatpush1.bf16.msra.mxu0 %v657
        %678 = vmatprep.subr.bf16.mxu0 0
        %679 = vmatpush1.bf16.msra.mxu0 %v656
        %680 = vmatprep.subr.bf16.mxu0 0
        %681 = vmatpush1.bf16.msra.mxu0 %v655
        %682 = vmatprep.subr.bf16.mxu0 0
        %683 = vmatpush1.bf16.msra.mxu0 %v654
        %684 = vmatprep.subr.bf16.mxu0 0
        %685 = vmatpush2.bf16.msra.mxu0 0
        %686 = vmatprep.subr.bf16.mxu0 0
        %687 = vmatpush2.bf16.msra.mxu0 0
        %688 = vmatprep.subr.bf16.mxu0 0
        %689 = vmatpush2.bf16.msra.mxu0 0
        %690 = vmatprep.subr.bf16.mxu0 0
        %691 = vmatpush2.bf16.msra.mxu0 0
        %692 = vmatprep.subr.bf16.mxu0 0
        %693 = vmatpush2.bf16.msra.mxu0 0
        %694 = vmatprep.subr.bf16.mxu0 0
        %695 = vmatpush2.bf16.msra.mxu0 0
        %696 = vmatprep.subr.bf16.mxu0 0
        %697 = vmatpush2.bf16.msra.mxu0 0
        %698 = vmatprep.subr.bf16.mxu0 0
        %699 = vmatpush2.bf16.msra.mxu0 0
        %700 = vmatprep.mubr.bf16.mxu0 0
        %701 = vmatmul.mubr.bf16.gmra.mxu0 %v663
        %v702 = vpop.f32.mrf.mxu0
        %v703 = vadd.f32 0.0, %v702
        %v704 = vpop.f32.mrf.mxu0
        %v705 = vpop.f32.mrf.mxu0
        %v706 = vadd.f32 0.0, %v705
        %v707 = vpop.f32.mrf.mxu0
        %708 = vmatprep.mubr.bf16.mxu0 0
        %709 = vmatmul.mubr.bf16.gmra.mxu0 %v666
        %v710 = vpop.f32.mrf.mxu0
        %v711 = vadd.f32 0.0, %v710
        %v712 = vpop.f32.mrf.mxu0
        %v713 = vpop.f32.mrf.mxu0
        %v714 = vpop.f32.mrf.mxu0
        %715 = vdwg.mxu0
        %v716 = vadd.f32 %v602, %v703
        %v717 = vadd.f32 %v605, %v706
        %v718 = vadd.f32 %v610, %v711
        %v719 = vld [vmem:[%s412] sm:$0xf]
        %v720 = vld [vmem:[%s412 + $0x4] sm:$0xf]
        %v721 = vld [vmem:[%s412 + $0x8] sm:$0x3]
        %s722 = scalar_lea.vmem %s4, 96
        %v723 = vld [vmem:[%s722] sm:$0xf]
        %v724 = vld [vmem:[%s722 + $0x4] sm:$0xf]
        %v725 = vld [vmem:[%s722 + $0x8] sm:$0xf]
        %v726 = vld [vmem:[%s722 + $0xc] sm:$0xf]
        %v727 = vld [vmem:[%s722 + $0x10] sm:$0xf]
        %v728 = vld [vmem:[%s722 + $0x14] sm:$0xf]
        %v729 = vld [vmem:[%s722 + $0x18] sm:$0xf]
        %v730 = vld [vmem:[%s722 + $0x1c] sm:$0xf]
        %v734 = vunpack.c.l.b16 %v719
        %v735 = vunpack.c.l.b16 %v720
        %v736 = vunpack.c.l.b16 %v721
        %v737 = vpack.c.b16 %v735, %v734
        %v738 = vpack.c.b16 %v736, %v736
        %v747 = vunpack.c.l.b16 %v723
        %v748 = vunpack.c.l.b16 %v724
        %v749 = vunpack.c.l.b16 %v725
        %v750 = vunpack.c.l.b16 %v726
        %v751 = vunpack.c.l.b16 %v727
        %v752 = vunpack.c.l.b16 %v728
        %v753 = vunpack.c.l.b16 %v729
        %v754 = vunpack.c.l.b16 %v730
        %v755 = vpack.c.b16 %v748, %v747
        %v756 = vpack.c.b16 %v750, %v749
        %v757 = vpack.c.b16 %v752, %v751
        %v758 = vpack.c.b16 %v754, %v753
        %v764 = vsel %vm474, %v737, 0
        %v767 = vsel %vm474, %v738, 0
        %769 = vmatprep.subr.bf16.mxu0 0
        %770 = vmatpush1.bf16.msra.mxu0 0
        %771 = vmatprep.subr.bf16.mxu0 0
        %772 = vmatpush1.bf16.msra.mxu0 0
        %773 = vmatprep.subr.bf16.mxu0 0
        %774 = vmatpush1.bf16.msra.mxu0 0
        %775 = vmatprep.subr.bf16.mxu0 0
        %776 = vmatpush1.bf16.msra.mxu0 0
        %777 = vmatprep.subr.bf16.mxu0 0
        %778 = vmatpush1.bf16.msra.mxu0 %v758
        %779 = vmatprep.subr.bf16.mxu0 0
        %780 = vmatpush1.bf16.msra.mxu0 %v757
        %781 = vmatprep.subr.bf16.mxu0 0
        %782 = vmatpush1.bf16.msra.mxu0 %v756
        %783 = vmatprep.subr.bf16.mxu0 0
        %784 = vmatpush1.bf16.msra.mxu0 %v755
        %785 = vmatprep.subr.bf16.mxu0 0
        %786 = vmatpush2.bf16.msra.mxu0 0
        %787 = vmatprep.subr.bf16.mxu0 0
        %788 = vmatpush2.bf16.msra.mxu0 0
        %789 = vmatprep.subr.bf16.mxu0 0
        %790 = vmatpush2.bf16.msra.mxu0 0
        %791 = vmatprep.subr.bf16.mxu0 0
        %792 = vmatpush2.bf16.msra.mxu0 0
        %793 = vmatprep.subr.bf16.mxu0 0
        %794 = vmatpush2.bf16.msra.mxu0 0
        %795 = vmatprep.subr.bf16.mxu0 0
        %796 = vmatpush2.bf16.msra.mxu0 0
        %797 = vmatprep.subr.bf16.mxu0 0
        %798 = vmatpush2.bf16.msra.mxu0 0
        %799 = vmatprep.subr.bf16.mxu0 0
        %800 = vmatpush2.bf16.msra.mxu0 0
        %801 = vmatprep.mubr.bf16.mxu0 0
        %802 = vmatmul.mubr.bf16.gmra.mxu0 %v764
        %v803 = vpop.f32.mrf.mxu0
        %v804 = vadd.f32 0.0, %v803
        %v805 = vpop.f32.mrf.mxu0
        %v806 = vpop.f32.mrf.mxu0
        %v807 = vadd.f32 0.0, %v806
        %v808 = vpop.f32.mrf.mxu0
        %809 = vmatprep.mubr.bf16.mxu0 0
        %810 = vmatmul.mubr.bf16.gmra.mxu0 %v767
        %v811 = vpop.f32.mrf.mxu0
        %v812 = vadd.f32 0.0, %v811
        %v813 = vpop.f32.mrf.mxu0
        %v814 = vpop.f32.mrf.mxu0
        %v815 = vpop.f32.mrf.mxu0
        %816 = vdwg.mxu0
        %v817 = vadd.f32 %v716, %v804
        %v818 = vadd.f32 %v717, %v807
        %v819 = vadd.f32 %v718, %v812
        %v820 = vld [vmem:[%s417] sm:$0xf]
        %v821 = vld [vmem:[%s417 + $0x4] sm:$0xf]
        %v822 = vld [vmem:[%s417 + $0x8] sm:$0x3]
        %s823 = scalar_lea.vmem %s4, 128
        %v824 = vld [vmem:[%s823] sm:$0xf]
        %v825 = vld [vmem:[%s823 + $0x4] sm:$0xf]
        %v826 = vld [vmem:[%s823 + $0x8] sm:$0xf]
        %v827 = vld [vmem:[%s823 + $0xc] sm:$0xf]
        %v828 = vld [vmem:[%s823 + $0x10] sm:$0xf]
        %v829 = vld [vmem:[%s823 + $0x14] sm:$0xf]
        %v830 = vld [vmem:[%s823 + $0x18] sm:$0xf]
        %v831 = vld [vmem:[%s823 + $0x1c] sm:$0xf]
        %v835 = vunpack.c.l.b16 %v820
        %v836 = vunpack.c.l.b16 %v821
        %v837 = vunpack.c.l.b16 %v822
        %v838 = vpack.c.b16 %v836, %v835
        %v839 = vpack.c.b16 %v837, %v837
        %v848 = vunpack.c.l.b16 %v824
        %v849 = vunpack.c.l.b16 %v825
        %v850 = vunpack.c.l.b16 %v826
        %v851 = vunpack.c.l.b16 %v827
        %v852 = vunpack.c.l.b16 %v828
        %v853 = vunpack.c.l.b16 %v829
        %v854 = vunpack.c.l.b16 %v830
        %v855 = vunpack.c.l.b16 %v831
        %v856 = vpack.c.b16 %v849, %v848
        %v857 = vpack.c.b16 %v851, %v850
        %v858 = vpack.c.b16 %v853, %v852
        %v859 = vpack.c.b16 %v855, %v854
        %v865 = vsel %vm474, %v838, 0
        %v868 = vsel %vm474, %v839, 0
        %870 = vmatprep.subr.bf16.mxu0 0
        %871 = vmatpush1.bf16.msra.mxu0 0
        %872 = vmatprep.subr.bf16.mxu0 0
        %873 = vmatpush1.bf16.msra.mxu0 0
        %874 = vmatprep.subr.bf16.mxu0 0
        %875 = vmatpush1.bf16.msra.mxu0 0
        %876 = vmatprep.subr.bf16.mxu0 0
        %877 = vmatpush1.bf16.msra.mxu0 0
        %878 = vmatprep.subr.bf16.mxu0 0
        %879 = vmatpush1.bf16.msra.mxu0 %v859
        %880 = vmatprep.subr.bf16.mxu0 0
        %881 = vmatpush1.bf16.msra.mxu0 %v858
        %882 = vmatprep.subr.bf16.mxu0 0
        %883 = vmatpush1.bf16.msra.mxu0 %v857
        %884 = vmatprep.subr.bf16.mxu0 0
        %885 = vmatpush1.bf16.msra.mxu0 %v856
        %886 = vmatprep.subr.bf16.mxu0 0
        %887 = vmatpush2.bf16.msra.mxu0 0
        %888 = vmatprep.subr.bf16.mxu0 0
        %889 = vmatpush2.bf16.msra.mxu0 0
        %890 = vmatprep.subr.bf16.mxu0 0
        %891 = vmatpush2.bf16.msra.mxu0 0
        %892 = vmatprep.subr.bf16.mxu0 0
        %893 = vmatpush2.bf16.msra.mxu0 0
        %894 = vmatprep.subr.bf16.mxu0 0
        %895 = vmatpush2.bf16.msra.mxu0 0
        %896 = vmatprep.subr.bf16.mxu0 0
        %897 = vmatpush2.bf16.msra.mxu0 0
        %898 = vmatprep.subr.bf16.mxu0 0
        %899 = vmatpush2.bf16.msra.mxu0 0
        %900 = vmatprep.subr.bf16.mxu0 0
        %901 = vmatpush2.bf16.msra.mxu0 0
        %902 = vmatprep.mubr.bf16.mxu0 0
        %903 = vmatmul.mubr.bf16.gmra.mxu0 %v865
        %v904 = vpop.f32.mrf.mxu0
        %v905 = vadd.f32 0.0, %v904
        %v906 = vpop.f32.mrf.mxu0
        %v907 = vpop.f32.mrf.mxu0
        %v908 = vadd.f32 0.0, %v907
        %v909 = vpop.f32.mrf.mxu0
        %910 = vmatprep.mubr.bf16.mxu0 0
        %911 = vmatmul.mubr.bf16.gmra.mxu0 %v868
        %v912 = vpop.f32.mrf.mxu0
        %v913 = vadd.f32 0.0, %v912
        %v914 = vpop.f32.mrf.mxu0
        %v915 = vpop.f32.mrf.mxu0
        %v916 = vpop.f32.mrf.mxu0
        %917 = vdwg.mxu0
        %v918 = vadd.f32 %v817, %v905
        %v919 = vadd.f32 %v818, %v908
        %v920 = vadd.f32 %v819, %v913
        %s921 = scalar_lea.vmem %s4, 160
        %v922 = vld [vmem:[%s921] sm:$0xf]
        %v923 = vld [vmem:[%s921 + $0x4] sm:$0xf]
        %v924 = vld [vmem:[%s921 + $0x8] sm:$0xf]
        %v925 = vld [vmem:[%s921 + $0xc] sm:$0xf]
        %v926 = vld [vmem:[%s921 + $0x10] sm:$0xf]
        %v927 = vld [vmem:[%s921 + $0x14] sm:$0xf]
        %v928 = vld [vmem:[%s921 + $0x18] sm:$0xf]
        %v929 = vld [vmem:[%s921 + $0x1c] sm:$0xf]
        %v930 = vshrl.u32 %v737, 16
        %v932 = vshll.u32 %v737, 16
        %v934 = vrot.slane %v932, 1
        %v935 = vor.u32 %v930, %v934
        %v936 = vshll.u32 %v738, 16
        %v938 = vrot.slane %v936, 1
        %v939 = vsel %vm624, %v935, %v938
        %v940 = vshrl.u32 %v738, 16
        %v942 = vor.u32 %v940, %v938
        %v951 = vunpack.c.l.b16 %v922
        %v952 = vunpack.c.l.b16 %v923
        %v953 = vunpack.c.l.b16 %v924
        %v954 = vunpack.c.l.b16 %v925
        %v955 = vunpack.c.l.b16 %v926
        %v956 = vunpack.c.l.b16 %v927
        %v957 = vunpack.c.l.b16 %v928
        %v958 = vunpack.c.l.b16 %v929
        %v959 = vpack.c.b16 %v952, %v951
        %v960 = vpack.c.b16 %v954, %v953
        %v961 = vpack.c.b16 %v956, %v955
        %v962 = vpack.c.b16 %v958, %v957
        %v968 = vsel %vm474, %v939, 0
        %v971 = vsel %vm474, %v942, 0
        %973 = vmatprep.subr.bf16.mxu0 0
        %974 = vmatpush1.bf16.msra.mxu0 0
        %975 = vmatprep.subr.bf16.mxu0 0
        %976 = vmatpush1.bf16.msra.mxu0 0
        %977 = vmatprep.subr.bf16.mxu0 0
        %978 = vmatpush1.bf16.msra.mxu0 0
        %979 = vmatprep.subr.bf16.mxu0 0
        %980 = vmatpush1.bf16.msra.mxu0 0
        %981 = vmatprep.subr.bf16.mxu0 0
        %982 = vmatpush1.bf16.msra.mxu0 %v962
        %983 = vmatprep.subr.bf16.mxu0 0
        %984 = vmatpush1.bf16.msra.mxu0 %v961
        %985 = vmatprep.subr.bf16.mxu0 0
        %986 = vmatpush1.bf16.msra.mxu0 %v960
        %987 = vmatprep.subr.bf16.mxu0 0
        %988 = vmatpush1.bf16.msra.mxu0 %v959
        %989 = vmatprep.subr.bf16.mxu0 0
        %990 = vmatpush2.bf16.msra.mxu0 0
        %991 = vmatprep.subr.bf16.mxu0 0
        %992 = vmatpush2.bf16.msra.mxu0 0
        %993 = vmatprep.subr.bf16.mxu0 0
        %994 = vmatpush2.bf16.msra.mxu0 0
        %995 = vmatprep.subr.bf16.mxu0 0
        %996 = vmatpush2.bf16.msra.mxu0 0
        %997 = vmatprep.subr.bf16.mxu0 0
        %998 = vmatpush2.bf16.msra.mxu0 0
        %999 = vmatprep.subr.bf16.mxu0 0
        %1000 = vmatpush2.bf16.msra.mxu0 0
        %1001 = vmatprep.subr.bf16.mxu0 0
        %1002 = vmatpush2.bf16.msra.mxu0 0
        %1003 = vmatprep.subr.bf16.mxu0 0
        %1004 = vmatpush2.bf16.msra.mxu0 0
        %1005 = vmatprep.mubr.bf16.mxu0 0
        %1006 = vmatmul.mubr.bf16.gmra.mxu0 %v968
        %v1007 = vpop.f32.mrf.mxu0
        %v1008 = vadd.f32 0.0, %v1007
        %v1009 = vpop.f32.mrf.mxu0
        %v1010 = vpop.f32.mrf.mxu0
        %v1011 = vadd.f32 0.0, %v1010
        %v1012 = vpop.f32.mrf.mxu0
        %1013 = vmatprep.mubr.bf16.mxu0 0
        %1014 = vmatmul.mubr.bf16.gmra.mxu0 %v971
        %v1015 = vpop.f32.mrf.mxu0
        %v1016 = vadd.f32 0.0, %v1015
        %v1017 = vpop.f32.mrf.mxu0
        %v1018 = vpop.f32.mrf.mxu0
        %v1019 = vpop.f32.mrf.mxu0
        %1020 = vdwg.mxu0
        %v1021 = vadd.f32 %v918, %v1008
        %v1022 = vadd.f32 %v919, %v1011
        %v1023 = vadd.f32 %v920, %v1016
        %v1024 = vld [vmem:[%s402] sm:$0xc]
        %v1025 = vld [vmem:[%s402 + $0x8] sm:$0xf]
        %s1026 = scalar_lea.vmem %s4, 192
        %v1027 = vld [vmem:[%s1026] sm:$0xf]
        %v1028 = vld [vmem:[%s1026 + $0x4] sm:$0xf]
        %v1029 = vld [vmem:[%s1026 + $0x8] sm:$0xf]
        %v1030 = vld [vmem:[%s1026 + $0xc] sm:$0xf]
        %v1031 = vld [vmem:[%s1026 + $0x10] sm:$0xf]
        %v1032 = vld [vmem:[%s1026 + $0x14] sm:$0xf]
        %v1033 = vld [vmem:[%s1026 + $0x18] sm:$0xf]
        %v1034 = vld [vmem:[%s1026 + $0x1c] sm:$0xf]
        %v1037 = vunpack.c.l.b16 %v1024
        %v1038 = vunpack.c.l.b16 %v1025
        %v1039 = vpack.c.b16 %v533, %v1037
        %v1040 = vpack.c.b16 %v1038, %v1038
        %vm1041 = vsmask.f32 5376
        %v1043 = vshrl.u32 %v1039, 16
        %v1045 = vrot.slane %v1043, 2
        %v1046 = vshll.u32 %v1039, 16
        %v1048 = vrot.slane %v1046, 3
        %v1049 = vor.u32 %v1045, %v1048
        %v1051 = vshrl.u32 %v1040, 16
        %v1053 = vrot.slane %v1051, 2
        %v1054 = vshll.u32 %v1040, 16
        %v1056 = vrot.slane %v1054, 3
        %v1057 = vor.u32 %v1053, %v1056
        %v1058 = vsel %vm1041, %v1049, %v1057
        %v1067 = vunpack.c.l.b16 %v1027
        %v1068 = vunpack.c.l.b16 %v1028
        %v1069 = vunpack.c.l.b16 %v1029
        %v1070 = vunpack.c.l.b16 %v1030
        %v1071 = vunpack.c.l.b16 %v1031
        %v1072 = vunpack.c.l.b16 %v1032
        %v1073 = vunpack.c.l.b16 %v1033
        %v1074 = vunpack.c.l.b16 %v1034
        %v1075 = vpack.c.b16 %v1068, %v1067
        %v1076 = vpack.c.b16 %v1070, %v1069
        %v1077 = vpack.c.b16 %v1072, %v1071
        %v1078 = vpack.c.b16 %v1074, %v1073
        %v1084 = vsel %vm474, %v1058, 0
        %v1087 = vsel %vm474, %v1057, 0
        %1089 = vmatprep.subr.bf16.mxu0 0
        %1090 = vmatpush1.bf16.msra.mxu0 0
        %1091 = vmatprep.subr.bf16.mxu0 0
        %1092 = vmatpush1.bf16.msra.mxu0 0
        %1093 = vmatprep.subr.bf16.mxu0 0
        %1094 = vmatpush1.bf16.msra.mxu0 0
        %1095 = vmatprep.subr.bf16.mxu0 0
        %1096 = vmatpush1.bf16.msra.mxu0 0
        %1097 = vmatprep.subr.bf16.mxu0 0
        %1098 = vmatpush1.bf16.msra.mxu0 %v1078
        %1099 = vmatprep.subr.bf16.mxu0 0
        %1100 = vmatpush1.bf16.msra.mxu0 %v1077
        %1101 = vmatprep.subr.bf16.mxu0 0
        %1102 = vmatpush1.bf16.msra.mxu0 %v1076
        %1103 = vmatprep.subr.bf16.mxu0 0
        %1104 = vmatpush1.bf16.msra.mxu0 %v1075
        %1105 = vmatprep.subr.bf16.mxu0 0
        %1106 = vmatpush2.bf16.msra.mxu0 0
        %1107 = vmatprep.subr.bf16.mxu0 0
        %1108 = vmatpush2.bf16.msra.mxu0 0
        %1109 = vmatprep.subr.bf16.mxu0 0
        %1110 = vmatpush2.bf16.msra.mxu0 0
        %1111 = vmatprep.subr.bf16.mxu0 0
        %1112 = vmatpush2.bf16.msra.mxu0 0
        %1113 = vmatprep.subr.bf16.mxu0 0
        %1114 = vmatpush2.bf16.msra.mxu0 0
        %1115 = vmatprep.subr.bf16.mxu0 0
        %1116 = vmatpush2.bf16.msra.mxu0 0
        %1117 = vmatprep.subr.bf16.mxu0 0
        %1118 = vmatpush2.bf16.msra.mxu0 0
        %1119 = vmatprep.subr.bf16.mxu0 0
        %1120 = vmatpush2.bf16.msra.mxu0 0
        %1121 = vmatprep.mubr.bf16.mxu0 0
        %1122 = vmatmul.mubr.bf16.gmra.mxu0 %v1084
        %v1123 = vpop.f32.mrf.mxu0
        %v1124 = vadd.f32 0.0, %v1123
        %v1125 = vpop.f32.mrf.mxu0
        %v1126 = vpop.f32.mrf.mxu0
        %v1127 = vadd.f32 0.0, %v1126
        %v1128 = vpop.f32.mrf.mxu0
        %1129 = vmatprep.mubr.bf16.mxu0 0
        %1130 = vmatmul.mubr.bf16.gmra.mxu0 %v1087
        %v1131 = vpop.f32.mrf.mxu0
        %v1132 = vadd.f32 0.0, %v1131
        %v1133 = vpop.f32.mrf.mxu0
        %v1134 = vpop.f32.mrf.mxu0
        %v1135 = vpop.f32.mrf.mxu0
        %1136 = vdwg.mxu0
        %v1137 = vadd.f32 %v1021, %v1124
        %v1138 = vadd.f32 %v1022, %v1127
        %v1139 = vadd.f32 %v1023, %v1132
        %v1140 = vld [vmem:[%s407] sm:$0xc]
        %v1141 = vld [vmem:[%s407 + $0x8] sm:$0xf]
        %s1142 = scalar_lea.vmem %s4, 224
        %v1143 = vld [vmem:[%s1142] sm:$0xf]
        %v1144 = vld [vmem:[%s1142 + $0x4] sm:$0xf]
        %v1145 = vld [vmem:[%s1142 + $0x8] sm:$0xf]
        %v1146 = vld [vmem:[%s1142 + $0xc] sm:$0xf]
        %v1147 = vld [vmem:[%s1142 + $0x10] sm:$0xf]
        %v1148 = vld [vmem:[%s1142 + $0x14] sm:$0xf]
        %v1149 = vld [vmem:[%s1142 + $0x18] sm:$0xf]
        %v1150 = vld [vmem:[%s1142 + $0x1c] sm:$0xf]
        %v1153 = vunpack.c.l.b16 %v1140
        %v1154 = vunpack.c.l.b16 %v1141
        %v1155 = vpack.c.b16 %v446, %v1153
        %v1156 = vpack.c.b16 %v1154, %v1154
        %v1158 = vshrl.u32 %v1155, 16
        %v1160 = vrot.slane %v1158, 2
        %v1161 = vshll.u32 %v1155, 16
        %v1163 = vrot.slane %v1161, 3
        %v1164 = vor.u32 %v1160, %v1163
        %v1166 = vshrl.u32 %v1156, 16
        %v1168 = vrot.slane %v1166, 2
        %v1169 = vshll.u32 %v1156, 16
        %v1171 = vrot.slane %v1169, 3
        %v1172 = vor.u32 %v1168, %v1171
        %v1173 = vsel %vm1041, %v1164, %v1172
        %v1182 = vunpack.c.l.b16 %v1143
        %v1183 = vunpack.c.l.b16 %v1144
        %v1184 = vunpack.c.l.b16 %v1145
        %v1185 = vunpack.c.l.b16 %v1146
        %v1186 = vunpack.c.l.b16 %v1147
        %v1187 = vunpack.c.l.b16 %v1148
        %v1188 = vunpack.c.l.b16 %v1149
        %v1189 = vunpack.c.l.b16 %v1150
        %v1190 = vpack.c.b16 %v1183, %v1182
        %v1191 = vpack.c.b16 %v1185, %v1184
        %v1192 = vpack.c.b16 %v1187, %v1186
        %v1193 = vpack.c.b16 %v1189, %v1188
        %v1199 = vsel %vm474, %v1173, 0
        %v1202 = vsel %vm474, %v1172, 0
        %1204 = vmatprep.subr.bf16.mxu0 0
        %1205 = vmatpush1.bf16.msra.mxu0 0
        %1206 = vmatprep.subr.bf16.mxu0 0
        %1207 = vmatpush1.bf16.msra.mxu0 0
        %1208 = vmatprep.subr.bf16.mxu0 0
        %1209 = vmatpush1.bf16.msra.mxu0 0
        %1210 = vmatprep.subr.bf16.mxu0 0
        %1211 = vmatpush1.bf16.msra.mxu0 0
        %1212 = vmatprep.subr.bf16.mxu0 0
        %1213 = vmatpush1.bf16.msra.mxu0 %v1193
        %1214 = vmatprep.subr.bf16.mxu0 0
        %1215 = vmatpush1.bf16.msra.mxu0 %v1192
        %1216 = vmatprep.subr.bf16.mxu0 0
        %1217 = vmatpush1.bf16.msra.mxu0 %v1191
        %1218 = vmatprep.subr.bf16.mxu0 0
        %1219 = vmatpush1.bf16.msra.mxu0 %v1190
        %1220 = vmatprep.subr.bf16.mxu0 0
        %1221 = vmatpush2.bf16.msra.mxu0 0
        %1222 = vmatprep.subr.bf16.mxu0 0
        %1223 = vmatpush2.bf16.msra.mxu0 0
        %1224 = vmatprep.subr.bf16.mxu0 0
        %1225 = vmatpush2.bf16.msra.mxu0 0
        %1226 = vmatprep.subr.bf16.mxu0 0
        %1227 = vmatpush2.bf16.msra.mxu0 0
        %1228 = vmatprep.subr.bf16.mxu0 0
        %1229 = vmatpush2.bf16.msra.mxu0 0
        %1230 = vmatprep.subr.bf16.mxu0 0
        %1231 = vmatpush2.bf16.msra.mxu0 0
        %1232 = vmatprep.subr.bf16.mxu0 0
        %1233 = vmatpush2.bf16.msra.mxu0 0
        %1234 = vmatprep.subr.bf16.mxu0 0
        %1235 = vmatpush2.bf16.msra.mxu0 0
        %1236 = vmatprep.mubr.bf16.mxu0 0
        %1237 = vmatmul.mubr.bf16.gmra.mxu0 %v1199
        %v1238 = vpop.f32.mrf.mxu0
        %v1239 = vadd.f32 0.0, %v1238
        %v1240 = vpop.f32.mrf.mxu0
        %v1241 = vpop.f32.mrf.mxu0
        %v1242 = vadd.f32 0.0, %v1241
        %v1243 = vpop.f32.mrf.mxu0
        %1244 = vmatprep.mubr.bf16.mxu0 0
        %1245 = vmatmul.mubr.bf16.gmra.mxu0 %v1202
        %v1246 = vpop.f32.mrf.mxu0
        %v1247 = vadd.f32 0.0, %v1246
        %v1248 = vpop.f32.mrf.mxu0
        %v1249 = vpop.f32.mrf.mxu0
        %v1250 = vpop.f32.mrf.mxu0
        %1251 = vdwg.mxu0
        %v1252 = vadd.f32 %v1137, %v1239
        %v1253 = vadd.f32 %v1138, %v1242
        %v1254 = vadd.f32 %v1139, %v1247
        %v1255 = vld [vmem:[%s402] sm:$0x8]
        %v1256 = vld [vmem:[%s402 + $0x4] sm:$0xf]
        %v1257 = vld [vmem:[%s402 + $0x8] sm:$0xf]
        %v1258 = vld [vmem:[%s402 + $0xc] sm:$0x1]
        %s1259 = scalar_lea.vmem %s4, 256
        %v1260 = vld [vmem:[%s1259] sm:$0xf]
        %v1261 = vld [vmem:[%s1259 + $0x4] sm:$0xf]
        %v1262 = vld [vmem:[%s1259 + $0x8] sm:$0xf]
        %v1263 = vld [vmem:[%s1259 + $0xc] sm:$0xf]
        %v1264 = vld [vmem:[%s1259 + $0x10] sm:$0xf]
        %v1265 = vld [vmem:[%s1259 + $0x14] sm:$0xf]
        %v1266 = vld [vmem:[%s1259 + $0x18] sm:$0xf]
        %v1267 = vld [vmem:[%s1259 + $0x1c] sm:$0xf]
        %v1272 = vunpack.c.l.b16 %v1255
        %v1273 = vunpack.c.l.b16 %v1256
        %v1274 = vunpack.c.l.b16 %v1257
        %v1275 = vunpack.c.l.b16 %v1258
        %v1276 = vpack.c.b16 %v1273, %v1272
        %v1277 = vpack.c.b16 %v1275, %v1274
        %vm1278 = vcmask 1044480
        %v1279 = vrot.slane %v1276, 3
        %v1280 = vrot.slane %v1277, 3
        %v1281 = vsel %vm1278, %v1279, %v1280
        %v1290 = vunpack.c.l.b16 %v1260
        %v1291 = vunpack.c.l.b16 %v1261
        %v1292 = vunpack.c.l.b16 %v1262
        %v1293 = vunpack.c.l.b16 %v1263
        %v1294 = vunpack.c.l.b16 %v1264
        %v1295 = vunpack.c.l.b16 %v1265
        %v1296 = vunpack.c.l.b16 %v1266
        %v1297 = vunpack.c.l.b16 %v1267
        %v1298 = vpack.c.b16 %v1291, %v1290
        %v1299 = vpack.c.b16 %v1293, %v1292
        %v1300 = vpack.c.b16 %v1295, %v1294
        %v1301 = vpack.c.b16 %v1297, %v1296
        %v1307 = vsel %vm474, %v1281, 0
        %v1310 = vsel %vm474, %v1280, 0
        %1312 = vmatprep.subr.bf16.mxu0 0
        %1313 = vmatpush1.bf16.msra.mxu0 0
        %1314 = vmatprep.subr.bf16.mxu0 0
        %1315 = vmatpush1.bf16.msra.mxu0 0
        %1316 = vmatprep.subr.bf16.mxu0 0
        %1317 = vmatpush1.bf16.msra.mxu0 0
        %1318 = vmatprep.subr.bf16.mxu0 0
        %1319 = vmatpush1.bf16.msra.mxu0 0
        %1320 = vmatprep.subr.bf16.mxu0 0
        %1321 = vmatpush1.bf16.msra.mxu0 %v1301
        %1322 = vmatprep.subr.bf16.mxu0 0
        %1323 = vmatpush1.bf16.msra.mxu0 %v1300
        %1324 = vmatprep.subr.bf16.mxu0 0
        %1325 = vmatpush1.bf16.msra.mxu0 %v1299
        %1326 = vmatprep.subr.bf16.mxu0 0
        %1327 = vmatpush1.bf16.msra.mxu0 %v1298
        %1328 = vmatprep.subr.bf16.mxu0 0
        %1329 = vmatpush2.bf16.msra.mxu0 0
        %1330 = vmatprep.subr.bf16.mxu0 0
        %1331 = vmatpush2.bf16.msra.mxu0 0
        %1332 = vmatprep.subr.bf16.mxu0 0
        %1333 = vmatpush2.bf16.msra.mxu0 0
        %1334 = vmatprep.subr.bf16.mxu0 0
        %1335 = vmatpush2.bf16.msra.mxu0 0
        %1336 = vmatprep.subr.bf16.mxu0 0
        %1337 = vmatpush2.bf16.msra.mxu0 0
        %1338 = vmatprep.subr.bf16.mxu0 0
        %1339 = vmatpush2.bf16.msra.mxu0 0
        %1340 = vmatprep.subr.bf16.mxu0 0
        %1341 = vmatpush2.bf16.msra.mxu0 0
        %1342 = vmatprep.subr.bf16.mxu0 0
        %1343 = vmatpush2.bf16.msra.mxu0 0
        %1344 = vmatprep.mubr.bf16.mxu0 0
        %1345 = vmatmul.mubr.bf16.gmra.mxu0 %v1307
        %v1346 = vpop.f32.mrf.mxu0
        %v1347 = vadd.f32 0.0, %v1346
        %v1348 = vpop.f32.mrf.mxu0
        %v1349 = vpop.f32.mrf.mxu0
        %v1350 = vadd.f32 0.0, %v1349
        %v1351 = vpop.f32.mrf.mxu0
        %1352 = vmatprep.mubr.bf16.mxu0 0
        %1353 = vmatmul.mubr.bf16.gmra.mxu0 %v1310
        %v1354 = vpop.f32.mrf.mxu0
        %v1355 = vadd.f32 0.0, %v1354
        %v1356 = vpop.f32.mrf.mxu0
        %v1357 = vpop.f32.mrf.mxu0
        %v1358 = vpop.f32.mrf.mxu0
        %1359 = vdwg.mxu0
        %v1360 = vadd.f32 %v1252, %v1347
        %v1361 = vadd.f32 %v1253, %v1350
        %v1362 = vadd.f32 %v1254, %v1355
        %v1363 = vld [vmem:[%s5] sm:$0x1]
        %v1365 = vlaneseq
        %v1366 = vshrl.u32 %v1365, 7
        %v1367 = vsub.s32 0, %v1366
        %v1368 = vrot.slane %v1363, %v1367
        %v1370 = vadd.f32 %v1360, %v1368
        %v1371 = vadd.f32 %v1361, %v1368
        %v1372 = vadd.f32 %v1362, %v1368
        %v1373 = vmax.f32 %v1370, 0.0
        %v1374 = vmax.f32 %v1371, 0.0
        %v1375 = vmax.f32 %v1372, 0.0
        %v1376 = vpack.c.bf16 %v1374, %v1373
        %v1377 = vpack.c.bf16 %v1375, %v1375
        %v1378 = vld [vmem:[%s8] sm:$0xf]
        %v1379 = vld [vmem:[%s8 + $0x4] sm:$0xf]
        %v1380 = vld [vmem:[%s8 + $0x8] sm:$0xf]
        %v1381 = vld [vmem:[%s8 + $0xc] sm:$0xf]
        %v1382 = vld [vmem:[%s8 + $0x10] sm:$0xf]
        %v1383 = vld [vmem:[%s8 + $0x14] sm:$0xf]
        %v1384 = vld [vmem:[%s8 + $0x18] sm:$0xf]
        %v1385 = vld [vmem:[%s8 + $0x1c] sm:$0xf]
        %v1386 = vld [vmem:[%s9] sm:$0x1]
        %v1388 = vlaneseq
        %v1389 = vshrl.u32 %v1388, 7
        %v1390 = vsub.s32 0, %v1389
        %v1391 = vrot.slane %v1386, %v1390
        %v1401 = vunpack.c.l.b16 %v1378
        %v1402 = vunpack.c.l.b16 %v1379
        %v1403 = vunpack.c.l.b16 %v1380
        %v1404 = vunpack.c.l.b16 %v1381
        %v1405 = vunpack.c.l.b16 %v1382
        %v1406 = vunpack.c.l.b16 %v1383
        %v1407 = vunpack.c.l.b16 %v1384
        %v1408 = vunpack.c.l.b16 %v1385
        %v1409 = vpack.c.b16 %v1402, %v1401
        %v1410 = vpack.c.b16 %v1404, %v1403
        %v1411 = vpack.c.b16 %v1406, %v1405
        %v1412 = vpack.c.b16 %v1408, %v1407
        %1417 = vmatprep.subr.bf16.mxu0 0
        %1418 = vmatpush1.bf16.msra.mxu0 0
        %1419 = vmatprep.subr.bf16.mxu0 0
        %1420 = vmatpush1.bf16.msra.mxu0 0
        %1421 = vmatprep.subr.bf16.mxu0 0
        %1422 = vmatpush1.bf16.msra.mxu0 0
        %1423 = vmatprep.subr.bf16.mxu0 0
        %1424 = vmatpush1.bf16.msra.mxu0 0
        %1425 = vmatprep.subr.bf16.mxu0 0
        %1426 = vmatpush1.bf16.msra.mxu0 %v1412
        %1427 = vmatprep.subr.bf16.mxu0 0
        %1428 = vmatpush1.bf16.msra.mxu0 %v1411
        %1429 = vmatprep.subr.bf16.mxu0 0
        %1430 = vmatpush1.bf16.msra.mxu0 %v1410
        %1431 = vmatprep.subr.bf16.mxu0 0
        %1432 = vmatpush1.bf16.msra.mxu0 %v1409
        %1433 = vmatprep.subr.bf16.mxu0 0
        %1434 = vmatpush2.bf16.msra.mxu0 0
        %1435 = vmatprep.subr.bf16.mxu0 0
        %1436 = vmatpush2.bf16.msra.mxu0 0
        %1437 = vmatprep.subr.bf16.mxu0 0
        %1438 = vmatpush2.bf16.msra.mxu0 0
        %1439 = vmatprep.subr.bf16.mxu0 0
        %1440 = vmatpush2.bf16.msra.mxu0 0
        %1441 = vmatprep.subr.bf16.mxu0 0
        %1442 = vmatpush2.bf16.msra.mxu0 0
        %1443 = vmatprep.subr.bf16.mxu0 0
        %1444 = vmatpush2.bf16.msra.mxu0 0
        %1445 = vmatprep.subr.bf16.mxu0 0
        %1446 = vmatpush2.bf16.msra.mxu0 0
        %1447 = vmatprep.subr.bf16.mxu0 0
        %1448 = vmatpush2.bf16.msra.mxu0 0
        %1449 = vmatprep.mubr.bf16.mxu0 0
        %1450 = vmatmul.mubr.bf16.gmra.mxu0 %v865
        %v1451 = vpop.f32.mrf.mxu0
        %v1452 = vadd.f32 %v1391, %v1451
        %v1453 = vpop.f32.mrf.mxu0
        %v1454 = vpop.f32.mrf.mxu0
        %v1455 = vadd.f32 %v1391, %v1454
        %v1456 = vpop.f32.mrf.mxu0
        %1457 = vmatprep.mubr.bf16.mxu0 0
        %1458 = vmatmul.mubr.bf16.gmra.mxu0 %v868
        %v1459 = vpop.f32.mrf.mxu0
        %v1460 = vadd.f32 %v1391, %v1459
        %v1461 = vpop.f32.mrf.mxu0
        %v1462 = vpop.f32.mrf.mxu0
        %v1463 = vpop.f32.mrf.mxu0
        %1464 = vdwg.mxu0
        %1465 = vst [vmem:[#allocation2] sm:$0xf] 0
        %1466 = vst [vmem:[#allocation2 + $0x4] sm:$0xf] 0
        %1467 = vst [vmem:[#allocation2 + $0x8] sm:$0xf] 0
        %1468 = vst [vmem:[#allocation2 + $0xc] sm:$0xf] 0
        %1469 = vst [vmem:[#allocation2 + $0x10] sm:$0x3] 0
        %v1471 = vunpack.c.l.b16 %v1376
        %v1472 = vpack.c.b16 %v1471, %v1471
        %v1474 = vshll.u32 %v1472, 16
        %v1476 = vrot.slane %v1474, 5
        %v1477 = vshrl.u32 %v1472, 16
        %v1479 = vrot.slane %v1477, 4
        %v1480 = vor.u32 %v1479, %v1476
        %v1481 = vrot.slane %v1480, 4
        %vm1484 = vcmask 1043459
        %vm1485 = vsmask.f32 7950
        %vm1486 = vmand %vm1484, %vm1485
        %v1487 = vld [vmem:[#allocation2] sm:$0x8]
        %v1488 = vsel %vm1486, %v1476, %v1487
        %1489 = vst [vmem:[#allocation2] sm:$0x8] %v1488
        %vm1490 = vcmask 1041408
        %vm1491 = vsmask.f32 1280
        %vm1492 = vmand %vm1490, %vm1491
        %v1493 = vld [vmem:[#allocation2 + $0x4] sm:$0x3]
        %v1494 = vsel %vm1492, %v1481, %v1493
        %1495 = vst [vmem:[#allocation2 + $0x4] sm:$0x3] %v1494
        %v1496 = vunpack.c.h.b16 %v1376
        %v1497 = vpack.c.b16 %v1496, %v1496
        %vm1500 = vcmask 1043458
        %vm1501 = vsmask.f32 7946
        %vm1502 = vmand %vm1500, %vm1501
        %v1503 = vld [vmem:[#allocation2 + $0x4] sm:$0xc]
        %v1504 = vsel %vm1502, %v1472, %v1503
        %1505 = vst [vmem:[#allocation2 + $0x4] sm:$0xc] %v1504
        %vm1506 = vcmask 1040384
        %vm1507 = vsmask.f32 256
        %vm1508 = vmand %vm1506, %vm1507
        %v1509 = vld [vmem:[#allocation2 + $0x8] sm:$0x1]
        %v1510 = vsel %vm1508, %v1497, %v1509
        %1511 = vst [vmem:[#allocation2 + $0x8] sm:$0x1] %v1510
        %v1513 = vshrl.u32 %v1497, 16
        %v1515 = vrot.slane %v1513, 7
        %v1516 = vshll.u32 %v1497, 16
        %v1518 = vor.u32 %v1515, %v1516
        %vm1520 = vcmask 1043457
        %vm1521 = vsmask.f32 3334
        %vm1522 = vmand %vm1520, %vm1521
        %v1523 = vld [vmem:[#allocation2 + $0x8] sm:$0xe]
        %v1524 = vsel %vm1522, %v1518, %v1523
        %1525 = vst [vmem:[#allocation2 + $0x8] sm:$0xe] %v1524
        %v1527 = vunpack.c.l.b16 %v1377
        %v1528 = vpack.c.b16 %v1527, %v1527
        %vm1529 = vcmask 1044484
        %vm1530 = vmor %vm1506, %vm1529
        %v1531 = vrot.slane %v1497, 7
        %v1532 = vrot.slane %v1531, 4
        %v1533 = vrot.slane %v1528, 7
        %v1534 = vsel %vm1530, %v1532, %v1533
        %vm1536 = vcmask 1042432
        %vm1537 = vsmask.f32 2306
        %vm1538 = vmand %vm1536, %vm1537
        %v1539 = vld [vmem:[#allocation2 + $0xc] sm:$0x7]
        %v1540 = vsel %vm1538, %v1534, %v1539
        %1541 = vst [vmem:[#allocation2 + $0xc] sm:$0x7] %v1540
        %v1542 = vld [vmem:[#allocation2] sm:$0xf]
        %v1543 = vld [vmem:[#allocation2 + $0x4] sm:$0xf]
        %v1544 = vld [vmem:[#allocation2 + $0x8] sm:$0x7]
        %v1545 = vld [vmem:[%s6] sm:$0xf]
        %v1546 = vld [vmem:[%s6 + $0x4] sm:$0xf]
        %v1547 = vld [vmem:[%s6 + $0x8] sm:$0xf]
        %v1548 = vld [vmem:[%s6 + $0xc] sm:$0xf]
        %v1549 = vld [vmem:[%s6 + $0x10] sm:$0xf]
        %v1550 = vld [vmem:[%s6 + $0x14] sm:$0xf]
        %v1551 = vld [vmem:[%s6 + $0x18] sm:$0xf]
        %v1552 = vld [vmem:[%s6 + $0x1c] sm:$0xf]
        %v1553 = vld [vmem:[%s6 + $0x20] sm:$0xf]
        %v1554 = vld [vmem:[%s6 + $0x24] sm:$0xf]
        %v1555 = vld [vmem:[%s6 + $0x28] sm:$0xf]
        %v1556 = vld [vmem:[%s6 + $0x2c] sm:$0xf]
        %v1557 = vld [vmem:[%s6 + $0x30] sm:$0xf]
        %v1558 = vld [vmem:[%s6 + $0x34] sm:$0xf]
        %v1559 = vld [vmem:[%s6 + $0x38] sm:$0xf]
        %v1560 = vld [vmem:[%s6 + $0x3c] sm:$0xf]
        %v1561 = vld [vmem:[#allocation2 + $0x8] sm:$0xf]
        %s1562 = scalar_lea.vmem %s6, 64
        %v1563 = vld [vmem:[%s1562] sm:$0xf]
        %v1564 = vld [vmem:[%s1562 + $0x4] sm:$0xf]
        %v1565 = vld [vmem:[%s1562 + $0x8] sm:$0xf]
        %v1566 = vld [vmem:[%s1562 + $0xc] sm:$0xf]
        %v1567 = vld [vmem:[%s1562 + $0x10] sm:$0xf]
        %v1568 = vld [vmem:[%s1562 + $0x14] sm:$0xf]
        %v1569 = vld [vmem:[%s1562 + $0x18] sm:$0xf]
        %v1570 = vld [vmem:[%s1562 + $0x1c] sm:$0xf]
        %v1571 = vld [vmem:[%s1562 + $0x20] sm:$0xf]
        %v1572 = vld [vmem:[%s1562 + $0x24] sm:$0xf]
        %v1573 = vld [vmem:[%s1562 + $0x28] sm:$0xf]
        %v1574 = vld [vmem:[%s1562 + $0x2c] sm:$0xf]
        %v1575 = vld [vmem:[%s1562 + $0x30] sm:$0xf]
        %v1576 = vld [vmem:[%s1562 + $0x34] sm:$0xf]
        %v1577 = vld [vmem:[%s1562 + $0x38] sm:$0xf]
        %v1578 = vld [vmem:[%s1562 + $0x3c] sm:$0xf]
        %v1582 = vunpack.c.l.b16 %v1542
        %v1583 = vunpack.c.l.b16 %v1543
        %v1584 = vunpack.c.l.b16 %v1561
        %v1585 = vpack.c.b16 %v1583, %v1582
        %v1586 = vpack.c.b16 %v1584, %v1584
        %v1588 = vshrl.u32 %v1585, 16
        %v1590 = vshll.u32 %v1585, 16
        %v1592 = vrot.slane %v1590, 1
        %v1593 = vor.u32 %v1588, %v1592
        %v1595 = vshll.u32 %v1586, 16
        %v1597 = vrot.slane %v1595, 1
        %v1598 = vsel %vm624, %v1593, %v1597
        %v1599 = vshrl.u32 %v1586, 16
        %v1601 = vor.u32 %v1599, %v1597
        %v1620 = vunpack.c.l.b16 %v1563
        %v1621 = vunpack.c.l.b16 %v1564
        %v1622 = vunpack.c.l.b16 %v1565
        %v1623 = vunpack.c.l.b16 %v1566
        %v1624 = vunpack.c.l.b16 %v1567
        %v1625 = vunpack.c.l.b16 %v1568
        %v1626 = vunpack.c.l.b16 %v1569
        %v1627 = vunpack.c.l.b16 %v1570
        %v1628 = vunpack.c.l.b16 %v1571
        %v1629 = vunpack.c.l.b16 %v1572
        %v1630 = vunpack.c.l.b16 %v1573
        %v1631 = vunpack.c.l.b16 %v1574
        %v1632 = vunpack.c.l.b16 %v1575
        %v1633 = vunpack.c.l.b16 %v1576
        %v1634 = vunpack.c.l.b16 %v1577
        %v1635 = vunpack.c.l.b16 %v1578
        %v1636 = vpack.c.b16 %v1621, %v1620
        %v1637 = vpack.c.b16 %v1623, %v1622
        %v1638 = vpack.c.b16 %v1625, %v1624
        %v1639 = vpack.c.b16 %v1627, %v1626
        %v1640 = vpack.c.b16 %v1629, %v1628
        %v1641 = vpack.c.b16 %v1631, %v1630
        %v1642 = vpack.c.b16 %v1633, %v1632
        %v1643 = vpack.c.b16 %v1635, %v1634
        %1652 = vmatprep.subr.bf16.mxu0 0
        %1653 = vmatpush1.bf16.msra.mxu0 %v1643
        %1654 = vmatprep.subr.bf16.mxu0 0
        %1655 = vmatpush1.bf16.msra.mxu0 %v1642
        %1656 = vmatprep.subr.bf16.mxu0 0
        %1657 = vmatpush1.bf16.msra.mxu0 %v1641
        %1658 = vmatprep.subr.bf16.mxu0 0
        %1659 = vmatpush1.bf16.msra.mxu0 %v1640
        %1660 = vmatprep.subr.bf16.mxu0 0
        %1661 = vmatpush1.bf16.msra.mxu0 %v1639
        %1662 = vmatprep.subr.bf16.mxu0 0
        %1663 = vmatpush1.bf16.msra.mxu0 %v1638
        %1664 = vmatprep.subr.bf16.mxu0 0
        %1665 = vmatpush1.bf16.msra.mxu0 %v1637
        %1666 = vmatprep.subr.bf16.mxu0 0
        %1667 = vmatpush1.bf16.msra.mxu0 %v1636
        %1668 = vmatprep.subr.bf16.mxu0 0
        %1669 = vmatpush2.bf16.msra.mxu0 0
        %1670 = vmatprep.subr.bf16.mxu0 0
        %1671 = vmatpush2.bf16.msra.mxu0 0
        %1672 = vmatprep.subr.bf16.mxu0 0
        %1673 = vmatpush2.bf16.msra.mxu0 0
        %1674 = vmatprep.subr.bf16.mxu0 0
        %1675 = vmatpush2.bf16.msra.mxu0 0
        %1676 = vmatprep.subr.bf16.mxu0 0
        %1677 = vmatpush2.bf16.msra.mxu0 0
        %1678 = vmatprep.subr.bf16.mxu0 0
        %1679 = vmatpush2.bf16.msra.mxu0 0
        %1680 = vmatprep.subr.bf16.mxu0 0
        %1681 = vmatpush2.bf16.msra.mxu0 0
        %1682 = vmatprep.subr.bf16.mxu0 0
        %1683 = vmatpush2.bf16.msra.mxu0 0
        %1684 = vmatprep.mubr.bf16.mxu0 0
        %1685 = vmatmul.mubr.bf16.gmra.mxu0 %v1598
        %v1686 = vpop.f32.mrf.mxu0
        %v1687 = vadd.f32 0.0, %v1686
        %v1688 = vpop.f32.mrf.mxu0
        %v1689 = vpop.f32.mrf.mxu0
        %v1690 = vadd.f32 0.0, %v1689
        %v1691 = vpop.f32.mrf.mxu0
        %1692 = vmatprep.mubr.bf16.mxu0 0
        %1693 = vmatmul.mubr.bf16.gmra.mxu0 %v1601
        %v1694 = vpop.f32.mrf.mxu0
        %v1695 = vadd.f32 0.0, %v1694
        %v1696 = vpop.f32.mrf.mxu0
        %v1697 = vpop.f32.mrf.mxu0
        %v1698 = vpop.f32.mrf.mxu0
        %1699 = vdwg.mxu0
        %v1701 = vunpack.c.l.b16 %v1544
        %v1702 = vpack.c.b16 %v1701, %v1701
        %v1721 = vunpack.c.l.b16 %v1545
        %v1722 = vunpack.c.l.b16 %v1546
        %v1723 = vunpack.c.l.b16 %v1547
        %v1724 = vunpack.c.l.b16 %v1548
        %v1725 = vunpack.c.l.b16 %v1549
        %v1726 = vunpack.c.l.b16 %v1550
        %v1727 = vunpack.c.l.b16 %v1551
        %v1728 = vunpack.c.l.b16 %v1552
        %v1729 = vunpack.c.l.b16 %v1553
        %v1730 = vunpack.c.l.b16 %v1554
        %v1731 = vunpack.c.l.b16 %v1555
        %v1732 = vunpack.c.l.b16 %v1556
        %v1733 = vunpack.c.l.b16 %v1557
        %v1734 = vunpack.c.l.b16 %v1558
        %v1735 = vunpack.c.l.b16 %v1559
        %v1736 = vunpack.c.l.b16 %v1560
        %v1737 = vpack.c.b16 %v1722, %v1721
        %v1738 = vpack.c.b16 %v1724, %v1723
        %v1739 = vpack.c.b16 %v1726, %v1725
        %v1740 = vpack.c.b16 %v1728, %v1727
        %v1741 = vpack.c.b16 %v1730, %v1729
        %v1742 = vpack.c.b16 %v1732, %v1731
        %v1743 = vpack.c.b16 %v1734, %v1733
        %v1744 = vpack.c.b16 %v1736, %v1735
        %1753 = vmatprep.subr.bf16.mxu0 0
        %1754 = vmatpush1.bf16.msra.mxu0 %v1744
        %1755 = vmatprep.subr.bf16.mxu0 0
        %1756 = vmatpush1.bf16.msra.mxu0 %v1743
        %1757 = vmatprep.subr.bf16.mxu0 0
        %1758 = vmatpush1.bf16.msra.mxu0 %v1742
        %1759 = vmatprep.subr.bf16.mxu0 0
        %1760 = vmatpush1.bf16.msra.mxu0 %v1741
        %1761 = vmatprep.subr.bf16.mxu0 0
        %1762 = vmatpush1.bf16.msra.mxu0 %v1740
        %1763 = vmatprep.subr.bf16.mxu0 0
        %1764 = vmatpush1.bf16.msra.mxu0 %v1739
        %1765 = vmatprep.subr.bf16.mxu0 0
        %1766 = vmatpush1.bf16.msra.mxu0 %v1738
        %1767 = vmatprep.subr.bf16.mxu0 0
        %1768 = vmatpush1.bf16.msra.mxu0 %v1737
        %1769 = vmatprep.subr.bf16.mxu0 0
        %1770 = vmatpush2.bf16.msra.mxu0 0
        %1771 = vmatprep.subr.bf16.mxu0 0
        %1772 = vmatpush2.bf16.msra.mxu0 0
        %1773 = vmatprep.subr.bf16.mxu0 0
        %1774 = vmatpush2.bf16.msra.mxu0 0
        %1775 = vmatprep.subr.bf16.mxu0 0
        %1776 = vmatpush2.bf16.msra.mxu0 0
        %1777 = vmatprep.subr.bf16.mxu0 0
        %1778 = vmatpush2.bf16.msra.mxu0 0
        %1779 = vmatprep.subr.bf16.mxu0 0
        %1780 = vmatpush2.bf16.msra.mxu0 0
        %1781 = vmatprep.subr.bf16.mxu0 0
        %1782 = vmatpush2.bf16.msra.mxu0 0
        %1783 = vmatprep.subr.bf16.mxu0 0
        %1784 = vmatpush2.bf16.msra.mxu0 0
        %1785 = vmatprep.mubr.bf16.mxu0 0
        %1786 = vmatmul.mubr.bf16.gmra.mxu0 %v1585
        %v1787 = vpop.f32.mrf.mxu0
        %v1788 = vadd.f32 %v1687, %v1787
        %v1789 = vpop.f32.mrf.mxu0
        %v1790 = vpop.f32.mrf.mxu0
        %v1791 = vadd.f32 %v1690, %v1790
        %v1792 = vpop.f32.mrf.mxu0
        %1793 = vmatprep.mubr.bf16.mxu0 0
        %1794 = vmatmul.mubr.bf16.gmra.mxu0 %v1702
        %v1795 = vpop.f32.mrf.mxu0
        %v1796 = vadd.f32 %v1695, %v1795
        %v1797 = vpop.f32.mrf.mxu0
        %v1798 = vpop.f32.mrf.mxu0
        %v1799 = vpop.f32.mrf.mxu0
        %1800 = vdwg.mxu0
        %v1801 = vld [vmem:[#allocation2] sm:$0xe]
        %s1802 = scalar_lea.vmem %s6, 128
        %v1803 = vld [vmem:[%s1802] sm:$0xf]
        %v1804 = vld [vmem:[%s1802 + $0x4] sm:$0xf]
        %v1805 = vld [vmem:[%s1802 + $0x8] sm:$0xf]
        %v1806 = vld [vmem:[%s1802 + $0xc] sm:$0xf]
        %v1807 = vld [vmem:[%s1802 + $0x10] sm:$0xf]
        %v1808 = vld [vmem:[%s1802 + $0x14] sm:$0xf]
        %v1809 = vld [vmem:[%s1802 + $0x18] sm:$0xf]
        %v1810 = vld [vmem:[%s1802 + $0x1c] sm:$0xf]
        %v1811 = vld [vmem:[%s1802 + $0x20] sm:$0xf]
        %v1812 = vld [vmem:[%s1802 + $0x24] sm:$0xf]
        %v1813 = vld [vmem:[%s1802 + $0x28] sm:$0xf]
        %v1814 = vld [vmem:[%s1802 + $0x2c] sm:$0xf]
        %v1815 = vld [vmem:[%s1802 + $0x30] sm:$0xf]
        %v1816 = vld [vmem:[%s1802 + $0x34] sm:$0xf]
        %v1817 = vld [vmem:[%s1802 + $0x38] sm:$0xf]
        %v1818 = vld [vmem:[%s1802 + $0x3c] sm:$0xf]
        %v1820 = vunpack.c.l.b16 %v1801
        %v1821 = vpack.c.b16 %v1583, %v1820
        %vm1822 = vcmask 1046528
        %v1823 = vrot.slane %v1821, 1
        %v1824 = vrot.slane %v1586, 1
        %v1825 = vsel %vm1822, %v1823, %v1824
        %v1844 = vunpack.c.l.b16 %v1803
        %v1845 = vunpack.c.l.b16 %v1804
        %v1846 = vunpack.c.l.b16 %v1805
        %v1847 = vunpack.c.l.b16 %v1806
        %v1848 = vunpack.c.l.b16 %v1807
        %v1849 = vunpack.c.l.b16 %v1808
        %v1850 = vunpack.c.l.b16 %v1809
        %v1851 = vunpack.c.l.b16 %v1810
        %v1852 = vunpack.c.l.b16 %v1811
        %v1853 = vunpack.c.l.b16 %v1812
        %v1854 = vunpack.c.l.b16 %v1813
        %v1855 = vunpack.c.l.b16 %v1814
        %v1856 = vunpack.c.l.b16 %v1815
        %v1857 = vunpack.c.l.b16 %v1816
        %v1858 = vunpack.c.l.b16 %v1817
        %v1859 = vunpack.c.l.b16 %v1818
        %v1860 = vpack.c.b16 %v1845, %v1844
        %v1861 = vpack.c.b16 %v1847, %v1846
        %v1862 = vpack.c.b16 %v1849, %v1848
        %v1863 = vpack.c.b16 %v1851, %v1850
        %v1864 = vpack.c.b16 %v1853, %v1852
        %v1865 = vpack.c.b16 %v1855, %v1854
        %v1866 = vpack.c.b16 %v1857, %v1856
        %v1867 = vpack.c.b16 %v1859, %v1858
        %1876 = vmatprep.subr.bf16.mxu0 0
        %1877 = vmatpush1.bf16.msra.mxu0 %v1867
        %1878 = vmatprep.subr.bf16.mxu0 0
        %1879 = vmatpush1.bf16.msra.mxu0 %v1866
        %1880 = vmatprep.subr.bf16.mxu0 0
        %1881 = vmatpush1.bf16.msra.mxu0 %v1865
        %1882 = vmatprep.subr.bf16.mxu0 0
        %1883 = vmatpush1.bf16.msra.mxu0 %v1864
        %1884 = vmatprep.subr.bf16.mxu0 0
        %1885 = vmatpush1.bf16.msra.mxu0 %v1863
        %1886 = vmatprep.subr.bf16.mxu0 0
        %1887 = vmatpush1.bf16.msra.mxu0 %v1862
        %1888 = vmatprep.subr.bf16.mxu0 0
        %1889 = vmatpush1.bf16.msra.mxu0 %v1861
        %1890 = vmatprep.subr.bf16.mxu0 0
        %1891 = vmatpush1.bf16.msra.mxu0 %v1860
        %1892 = vmatprep.subr.bf16.mxu0 0
        %1893 = vmatpush2.bf16.msra.mxu0 0
        %1894 = vmatprep.subr.bf16.mxu0 0
        %1895 = vmatpush2.bf16.msra.mxu0 0
        %1896 = vmatprep.subr.bf16.mxu0 0
        %1897 = vmatpush2.bf16.msra.mxu0 0
        %1898 = vmatprep.subr.bf16.mxu0 0
        %1899 = vmatpush2.bf16.msra.mxu0 0
        %1900 = vmatprep.subr.bf16.mxu0 0
        %1901 = vmatpush2.bf16.msra.mxu0 0
        %1902 = vmatprep.subr.bf16.mxu0 0
        %1903 = vmatpush2.bf16.msra.mxu0 0
        %1904 = vmatprep.subr.bf16.mxu0 0
        %1905 = vmatpush2.bf16.msra.mxu0 0
        %1906 = vmatprep.subr.bf16.mxu0 0
        %1907 = vmatpush2.bf16.msra.mxu0 0
        %1908 = vmatprep.mubr.bf16.mxu0 0
        %1909 = vmatmul.mubr.bf16.gmra.mxu0 %v1825
        %v1910 = vpop.f32.mrf.mxu0
        %v1911 = vadd.f32 0.0, %v1910
        %v1912 = vpop.f32.mrf.mxu0
        %v1913 = vpop.f32.mrf.mxu0
        %v1914 = vadd.f32 0.0, %v1913
        %v1915 = vpop.f32.mrf.mxu0
        %1916 = vmatprep.mubr.bf16.mxu0 0
        %1917 = vmatmul.mubr.bf16.gmra.mxu0 %v1824
        %v1918 = vpop.f32.mrf.mxu0
        %v1919 = vadd.f32 0.0, %v1918
        %v1920 = vpop.f32.mrf.mxu0
        %v1921 = vpop.f32.mrf.mxu0
        %v1922 = vpop.f32.mrf.mxu0
        %1923 = vdwg.mxu0
        %v1924 = vadd.f32 %v1788, %v1911
        %v1925 = vadd.f32 %v1791, %v1914
        %v1926 = vadd.f32 %v1796, %v1919
        %v1927 = vld [vmem:[#allocation2] sm:$0x8]
        %v1928 = vld [vmem:[#allocation2 + $0x4] sm:$0xf]
        %v1929 = vld [vmem:[#allocation2 + $0x8] sm:$0xf]
        %v1930 = vld [vmem:[#allocation2 + $0xc] sm:$0x3]
        %s1931 = scalar_lea.vmem %s6, 192
        %v1932 = vld [vmem:[%s1931] sm:$0xf]
        %v1933 = vld [vmem:[%s1931 + $0x4] sm:$0xf]
        %v1934 = vld [vmem:[%s1931 + $0x8] sm:$0xf]
        %v1935 = vld [vmem:[%s1931 + $0xc] sm:$0xf]
        %v1936 = vld [vmem:[%s1931 + $0x10] sm:$0xf]
        %v1937 = vld [vmem:[%s1931 + $0x14] sm:$0xf]
        %v1938 = vld [vmem:[%s1931 + $0x18] sm:$0xf]
        %v1939 = vld [vmem:[%s1931 + $0x1c] sm:$0xf]
        %v1940 = vld [vmem:[%s1931 + $0x20] sm:$0xf]
        %v1941 = vld [vmem:[%s1931 + $0x24] sm:$0xf]
        %v1942 = vld [vmem:[%s1931 + $0x28] sm:$0xf]
        %v1943 = vld [vmem:[%s1931 + $0x2c] sm:$0xf]
        %v1944 = vld [vmem:[%s1931 + $0x30] sm:$0xf]
        %v1945 = vld [vmem:[%s1931 + $0x34] sm:$0xf]
        %v1946 = vld [vmem:[%s1931 + $0x38] sm:$0xf]
        %v1947 = vld [vmem:[%s1931 + $0x3c] sm:$0xf]
        %v1952 = vunpack.c.l.b16 %v1927
        %v1953 = vunpack.c.l.b16 %v1928
        %v1954 = vunpack.c.l.b16 %v1929
        %v1955 = vunpack.c.l.b16 %v1930
        %v1956 = vpack.c.b16 %v1953, %v1952
        %v1957 = vpack.c.b16 %v1955, %v1954
        %v1958 = vrot.slane %v1956, 3
        %v1959 = vrot.slane %v1957, 3
        %v1960 = vsel %vm1278, %v1958, %v1959
        %v1979 = vunpack.c.l.b16 %v1932
        %v1980 = vunpack.c.l.b16 %v1933
        %v1981 = vunpack.c.l.b16 %v1934
        %v1982 = vunpack.c.l.b16 %v1935
        %v1983 = vunpack.c.l.b16 %v1936
        %v1984 = vunpack.c.l.b16 %v1937
        %v1985 = vunpack.c.l.b16 %v1938
        %v1986 = vunpack.c.l.b16 %v1939
        %v1987 = vunpack.c.l.b16 %v1940
        %v1988 = vunpack.c.l.b16 %v1941
        %v1989 = vunpack.c.l.b16 %v1942
        %v1990 = vunpack.c.l.b16 %v1943
        %v1991 = vunpack.c.l.b16 %v1944
        %v1992 = vunpack.c.l.b16 %v1945
        %v1993 = vunpack.c.l.b16 %v1946
        %v1994 = vunpack.c.l.b16 %v1947
        %v1995 = vpack.c.b16 %v1980, %v1979
        %v1996 = vpack.c.b16 %v1982, %v1981
        %v1997 = vpack.c.b16 %v1984, %v1983
        %v1998 = vpack.c.b16 %v1986, %v1985
        %v1999 = vpack.c.b16 %v1988, %v1987
        %v2000 = vpack.c.b16 %v1990, %v1989
        %v2001 = vpack.c.b16 %v1992, %v1991
        %v2002 = vpack.c.b16 %v1994, %v1993
        %2011 = vmatprep.subr.bf16.mxu0 0
        %2012 = vmatpush1.bf16.msra.mxu0 %v2002
        %2013 = vmatprep.subr.bf16.mxu0 0
        %2014 = vmatpush1.bf16.msra.mxu0 %v2001
        %2015 = vmatprep.subr.bf16.mxu0 0
        %2016 = vmatpush1.bf16.msra.mxu0 %v2000
        %2017 = vmatprep.subr.bf16.mxu0 0
        %2018 = vmatpush1.bf16.msra.mxu0 %v1999
        %2019 = vmatprep.subr.bf16.mxu0 0
        %2020 = vmatpush1.bf16.msra.mxu0 %v1998
        %2021 = vmatprep.subr.bf16.mxu0 0
        %2022 = vmatpush1.bf16.msra.mxu0 %v1997
        %2023 = vmatprep.subr.bf16.mxu0 0
        %2024 = vmatpush1.bf16.msra.mxu0 %v1996
        %2025 = vmatprep.subr.bf16.mxu0 0
        %2026 = vmatpush1.bf16.msra.mxu0 %v1995
        %2027 = vmatprep.subr.bf16.mxu0 0
        %2028 = vmatpush2.bf16.msra.mxu0 0
        %2029 = vmatprep.subr.bf16.mxu0 0
        %2030 = vmatpush2.bf16.msra.mxu0 0
        %2031 = vmatprep.subr.bf16.mxu0 0
        %2032 = vmatpush2.bf16.msra.mxu0 0
        %2033 = vmatprep.subr.bf16.mxu0 0
        %2034 = vmatpush2.bf16.msra.mxu0 0
        %2035 = vmatprep.subr.bf16.mxu0 0
        %2036 = vmatpush2.bf16.msra.mxu0 0
        %2037 = vmatprep.subr.bf16.mxu0 0
        %2038 = vmatpush2.bf16.msra.mxu0 0
        %2039 = vmatprep.subr.bf16.mxu0 0
        %2040 = vmatpush2.bf16.msra.mxu0 0
        %2041 = vmatprep.subr.bf16.mxu0 0
        %2042 = vmatpush2.bf16.msra.mxu0 0
        %2043 = vmatprep.mubr.bf16.mxu0 0
        %2044 = vmatmul.mubr.bf16.gmra.mxu0 %v1960
        %v2045 = vpop.f32.mrf.mxu0
        %v2046 = vadd.f32 0.0, %v2045
        %v2047 = vpop.f32.mrf.mxu0
        %v2048 = vpop.f32.mrf.mxu0
        %v2049 = vadd.f32 0.0, %v2048
        %v2050 = vpop.f32.mrf.mxu0
        %2051 = vmatprep.mubr.bf16.mxu0 0
        %2052 = vmatmul.mubr.bf16.gmra.mxu0 %v1959
        %v2053 = vpop.f32.mrf.mxu0
        %v2054 = vadd.f32 0.0, %v2053
        %v2055 = vpop.f32.mrf.mxu0
        %v2056 = vpop.f32.mrf.mxu0
        %v2057 = vpop.f32.mrf.mxu0
        %2058 = vdwg.mxu0
        %v2059 = vadd.f32 %v1924, %v2046
        %v2060 = vadd.f32 %v1925, %v2049
        %v2061 = vadd.f32 %v1926, %v2054
        %v2062 = vld [vmem:[#allocation2 + $0xc] sm:$0x7]
        %s2063 = scalar_lea.vmem %s6, 256
        %v2064 = vld [vmem:[%s2063] sm:$0xf]
        %v2065 = vld [vmem:[%s2063 + $0x4] sm:$0xf]
        %v2066 = vld [vmem:[%s2063 + $0x8] sm:$0xf]
        %v2067 = vld [vmem:[%s2063 + $0xc] sm:$0xf]
        %v2068 = vld [vmem:[%s2063 + $0x10] sm:$0xf]
        %v2069 = vld [vmem:[%s2063 + $0x14] sm:$0xf]
        %v2070 = vld [vmem:[%s2063 + $0x18] sm:$0xf]
        %v2071 = vld [vmem:[%s2063 + $0x1c] sm:$0xf]
        %v2072 = vld [vmem:[%s2063 + $0x20] sm:$0xf]
        %v2073 = vld [vmem:[%s2063 + $0x24] sm:$0xf]
        %v2074 = vld [vmem:[%s2063 + $0x28] sm:$0xf]
        %v2075 = vld [vmem:[%s2063 + $0x2c] sm:$0xf]
        %v2076 = vld [vmem:[%s2063 + $0x30] sm:$0xf]
        %v2077 = vld [vmem:[%s2063 + $0x34] sm:$0xf]
        %v2078 = vld [vmem:[%s2063 + $0x38] sm:$0xf]
        %v2079 = vld [vmem:[%s2063 + $0x3c] sm:$0xf]
        %v2081 = vunpack.c.l.b16 %v2062
        %v2082 = vpack.c.b16 %v2081, %v1954
        %vm2083 = vsmask.f32 4352
        %v2085 = vshrl.u32 %v1956, 16
        %v2087 = vrot.slane %v2085, 3
        %v2088 = vshll.u32 %v1956, 16
        %v2090 = vrot.slane %v2088, 4
        %v2091 = vor.u32 %v2087, %v2090
        %v2093 = vshrl.u32 %v2082, 16
        %v2095 = vrot.slane %v2093, 3
        %v2096 = vshll.u32 %v2082, 16
        %v2098 = vrot.slane %v2096, 4
        %v2099 = vor.u32 %v2095, %v2098
        %v2100 = vsel %vm2083, %v2091, %v2099
        %v2119 = vunpack.c.l.b16 %v2064
        %v2120 = vunpack.c.l.b16 %v2065
        %v2121 = vunpack.c.l.b16 %v2066
        %v2122 = vunpack.c.l.b16 %v2067
        %v2123 = vunpack.c.l.b16 %v2068
        %v2124 = vunpack.c.l.b16 %v2069
        %v2125 = vunpack.c.l.b16 %v2070
        %v2126 = vunpack.c.l.b16 %v2071
        %v2127 = vunpack.c.l.b16 %v2072
        %v2128 = vunpack.c.l.b16 %v2073
        %v2129 = vunpack.c.l.b16 %v2074
        %v2130 = vunpack.c.l.b16 %v2075
        %v2131 = vunpack.c.l.b16 %v2076
        %v2132 = vunpack.c.l.b16 %v2077
        %v2133 = vunpack.c.l.b16 %v2078
        %v2134 = vunpack.c.l.b16 %v2079
        %v2135 = vpack.c.b16 %v2120, %v2119
        %v2136 = vpack.c.b16 %v2122, %v2121
        %v2137 = vpack.c.b16 %v2124, %v2123
        %v2138 = vpack.c.b16 %v2126, %v2125
        %v2139 = vpack.c.b16 %v2128, %v2127
        %v2140 = vpack.c.b16 %v2130, %v2129
        %v2141 = vpack.c.b16 %v2132, %v2131
        %v2142 = vpack.c.b16 %v2134, %v2133
        %2151 = vmatprep.subr.bf16.mxu0 0
        %2152 = vmatpush1.bf16.msra.mxu0 %v2142
        %2153 = vmatprep.subr.bf16.mxu0 0
        %2154 = vmatpush1.bf16.msra.mxu0 %v2141
        %2155 = vmatprep.subr.bf16.mxu0 0
        %2156 = vmatpush1.bf16.msra.mxu0 %v2140
        %2157 = vmatprep.subr.bf16.mxu0 0
        %2158 = vmatpush1.bf16.msra.mxu0 %v2139
        %2159 = vmatprep.subr.bf16.mxu0 0
        %2160 = vmatpush1.bf16.msra.mxu0 %v2138
        %2161 = vmatprep.subr.bf16.mxu0 0
        %2162 = vmatpush1.bf16.msra.mxu0 %v2137
        %2163 = vmatprep.subr.bf16.mxu0 0
        %2164 = vmatpush1.bf16.msra.mxu0 %v2136
        %2165 = vmatprep.subr.bf16.mxu0 0
        %2166 = vmatpush1.bf16.msra.mxu0 %v2135
        %2167 = vmatprep.subr.bf16.mxu0 0
        %2168 = vmatpush2.bf16.msra.mxu0 0
        %2169 = vmatprep.subr.bf16.mxu0 0
        %2170 = vmatpush2.bf16.msra.mxu0 0
        %2171 = vmatprep.subr.bf16.mxu0 0
        %2172 = vmatpush2.bf16.msra.mxu0 0
        %2173 = vmatprep.subr.bf16.mxu0 0
        %2174 = vmatpush2.bf16.msra.mxu0 0
        %2175 = vmatprep.subr.bf16.mxu0 0
        %2176 = vmatpush2.bf16.msra.mxu0 0
        %2177 = vmatprep.subr.bf16.mxu0 0
        %2178 = vmatpush2.bf16.msra.mxu0 0
        %2179 = vmatprep.subr.bf16.mxu0 0
        %2180 = vmatpush2.bf16.msra.mxu0 0
        %2181 = vmatprep.subr.bf16.mxu0 0
        %2182 = vmatpush2.bf16.msra.mxu0 0
        %2183 = vmatprep.mubr.bf16.mxu0 0
        %2184 = vmatmul.mubr.bf16.gmra.mxu0 %v2100
        %v2185 = vpop.f32.mrf.mxu0
        %v2186 = vadd.f32 0.0, %v2185
        %v2187 = vpop.f32.mrf.mxu0
        %v2188 = vpop.f32.mrf.mxu0
        %v2189 = vadd.f32 0.0, %v2188
        %v2190 = vpop.f32.mrf.mxu0
        %2191 = vmatprep.mubr.bf16.mxu0 0
        %2192 = vmatmul.mubr.bf16.gmra.mxu0 %v2099
        %v2193 = vpop.f32.mrf.mxu0
        %v2194 = vadd.f32 0.0, %v2193
        %v2195 = vpop.f32.mrf.mxu0
        %v2196 = vpop.f32.mrf.mxu0
        %v2197 = vpop.f32.mrf.mxu0
        %2198 = vdwg.mxu0
        %v2199 = vadd.f32 %v2059, %v2186
        %v2200 = vadd.f32 %v2060, %v2189
        %v2201 = vadd.f32 %v2061, %v2194
        %s2202 = scalar_lea.vmem %s6, 320
        %v2203 = vld [vmem:[%s2202] sm:$0xf]
        %v2204 = vld [vmem:[%s2202 + $0x4] sm:$0xf]
        %v2205 = vld [vmem:[%s2202 + $0x8] sm:$0xf]
        %v2206 = vld [vmem:[%s2202 + $0xc] sm:$0xf]
        %v2207 = vld [vmem:[%s2202 + $0x10] sm:$0xf]
        %v2208 = vld [vmem:[%s2202 + $0x14] sm:$0xf]
        %v2209 = vld [vmem:[%s2202 + $0x18] sm:$0xf]
        %v2210 = vld [vmem:[%s2202 + $0x1c] sm:$0xf]
        %v2211 = vld [vmem:[%s2202 + $0x20] sm:$0xf]
        %v2212 = vld [vmem:[%s2202 + $0x24] sm:$0xf]
        %v2213 = vld [vmem:[%s2202 + $0x28] sm:$0xf]
        %v2214 = vld [vmem:[%s2202 + $0x2c] sm:$0xf]
        %v2215 = vld [vmem:[%s2202 + $0x30] sm:$0xf]
        %v2216 = vld [vmem:[%s2202 + $0x34] sm:$0xf]
        %v2217 = vld [vmem:[%s2202 + $0x38] sm:$0xf]
        %v2218 = vld [vmem:[%s2202 + $0x3c] sm:$0xf]
        %v2219 = vpack.c.b16 %v1954, %v1953
        %v2220 = vpack.c.b16 %v2081, %v2081
        %v2239 = vunpack.c.l.b16 %v2203
        %v2240 = vunpack.c.l.b16 %v2204
        %v2241 = vunpack.c.l.b16 %v2205
        %v2242 = vunpack.c.l.b16 %v2206
        %v2243 = vunpack.c.l.b16 %v2207
        %v2244 = vunpack.c.l.b16 %v2208
        %v2245 = vunpack.c.l.b16 %v2209
        %v2246 = vunpack.c.l.b16 %v2210
        %v2247 = vunpack.c.l.b16 %v2211
        %v2248 = vunpack.c.l.b16 %v2212
        %v2249 = vunpack.c.l.b16 %v2213
        %v2250 = vunpack.c.l.b16 %v2214
        %v2251 = vunpack.c.l.b16 %v2215
        %v2252 = vunpack.c.l.b16 %v2216
        %v2253 = vunpack.c.l.b16 %v2217
        %v2254 = vunpack.c.l.b16 %v2218
        %v2255 = vpack.c.b16 %v2240, %v2239
        %v2256 = vpack.c.b16 %v2242, %v2241
        %v2257 = vpack.c.b16 %v2244, %v2243
        %v2258 = vpack.c.b16 %v2246, %v2245
        %v2259 = vpack.c.b16 %v2248, %v2247
        %v2260 = vpack.c.b16 %v2250, %v2249
        %v2261 = vpack.c.b16 %v2252, %v2251
        %v2262 = vpack.c.b16 %v2254, %v2253
        %2271 = vmatprep.subr.bf16.mxu0 0
        %2272 = vmatpush1.bf16.msra.mxu0 %v2262
        %2273 = vmatprep.subr.bf16.mxu0 0
        %2274 = vmatpush1.bf16.msra.mxu0 %v2261
        %2275 = vmatprep.subr.bf16.mxu0 0
        %2276 = vmatpush1.bf16.msra.mxu0 %v2260
        %2277 = vmatprep.subr.bf16.mxu0 0
        %2278 = vmatpush1.bf16.msra.mxu0 %v2259
        %2279 = vmatprep.subr.bf16.mxu0 0
        %2280 = vmatpush1.bf16.msra.mxu0 %v2258
        %2281 = vmatprep.subr.bf16.mxu0 0
        %2282 = vmatpush1.bf16.msra.mxu0 %v2257
        %2283 = vmatprep.subr.bf16.mxu0 0
        %2284 = vmatpush1.bf16.msra.mxu0 %v2256
        %2285 = vmatprep.subr.bf16.mxu0 0
        %2286 = vmatpush1.bf16.msra.mxu0 %v2255
        %2287 = vmatprep.subr.bf16.mxu0 0
        %2288 = vmatpush2.bf16.msra.mxu0 0
        %2289 = vmatprep.subr.bf16.mxu0 0
        %2290 = vmatpush2.bf16.msra.mxu0 0
        %2291 = vmatprep.subr.bf16.mxu0 0
        %2292 = vmatpush2.bf16.msra.mxu0 0
        %2293 = vmatprep.subr.bf16.mxu0 0
        %2294 = vmatpush2.bf16.msra.mxu0 0
        %2295 = vmatprep.subr.bf16.mxu0 0
        %2296 = vmatpush2.bf16.msra.mxu0 0
        %2297 = vmatprep.subr.bf16.mxu0 0
        %2298 = vmatpush2.bf16.msra.mxu0 0
        %2299 = vmatprep.subr.bf16.mxu0 0
        %2300 = vmatpush2.bf16.msra.mxu0 0
        %2301 = vmatprep.subr.bf16.mxu0 0
        %2302 = vmatpush2.bf16.msra.mxu0 0
        %2303 = vmatprep.mubr.bf16.mxu0 0
        %2304 = vmatmul.mubr.bf16.gmra.mxu0 %v2219
        %v2305 = vpop.f32.mrf.mxu0
        %v2306 = vadd.f32 0.0, %v2305
        %v2307 = vpop.f32.mrf.mxu0
        %v2308 = vpop.f32.mrf.mxu0
        %v2309 = vadd.f32 0.0, %v2308
        %v2310 = vpop.f32.mrf.mxu0
        %2311 = vmatprep.mubr.bf16.mxu0 0
        %2312 = vmatmul.mubr.bf16.gmra.mxu0 %v2220
        %v2313 = vpop.f32.mrf.mxu0
        %v2314 = vadd.f32 0.0, %v2313
        %v2315 = vpop.f32.mrf.mxu0
        %v2316 = vpop.f32.mrf.mxu0
        %v2317 = vpop.f32.mrf.mxu0
        %2318 = vdwg.mxu0
        %v2319 = vadd.f32 %v2199, %v2306
        %v2320 = vadd.f32 %v2200, %v2309
        %v2321 = vadd.f32 %v2201, %v2314
        %v2322 = vld [vmem:[#allocation2 + $0x4] sm:$0xc]
        %v2323 = vld [vmem:[#allocation2 + $0x8] sm:$0xf]
        %v2324 = vld [vmem:[#allocation2 + $0xc] sm:$0xf]
        %v2325 = vld [vmem:[#allocation2 + $0x10] sm:$0x1]
        %s2326 = scalar_lea.vmem %s6, 384
        %v2327 = vld [vmem:[%s2326] sm:$0xf]
        %v2328 = vld [vmem:[%s2326 + $0x4] sm:$0xf]
        %v2329 = vld [vmem:[%s2326 + $0x8] sm:$0xf]
        %v2330 = vld [vmem:[%s2326 + $0xc] sm:$0xf]
        %v2331 = vld [vmem:[%s2326 + $0x10] sm:$0xf]
        %v2332 = vld [vmem:[%s2326 + $0x14] sm:$0xf]
        %v2333 = vld [vmem:[%s2326 + $0x18] sm:$0xf]
        %v2334 = vld [vmem:[%s2326 + $0x1c] sm:$0xf]
        %v2335 = vld [vmem:[%s2326 + $0x20] sm:$0xf]
        %v2336 = vld [vmem:[%s2326 + $0x24] sm:$0xf]
        %v2337 = vld [vmem:[%s2326 + $0x28] sm:$0xf]
        %v2338 = vld [vmem:[%s2326 + $0x2c] sm:$0xf]
        %v2339 = vld [vmem:[%s2326 + $0x30] sm:$0xf]
        %v2340 = vld [vmem:[%s2326 + $0x34] sm:$0xf]
        %v2341 = vld [vmem:[%s2326 + $0x38] sm:$0xf]
        %v2342 = vld [vmem:[%s2326 + $0x3c] sm:$0xf]
        %v2347 = vunpack.c.l.b16 %v2322
        %v2348 = vunpack.c.l.b16 %v2323
        %v2349 = vunpack.c.l.b16 %v2324
        %v2350 = vunpack.c.l.b16 %v2325
        %v2351 = vpack.c.b16 %v2348, %v2347
        %v2352 = vpack.c.b16 %v2350, %v2349
        %vm2353 = vcmask 1045504
        %v2354 = vrot.slane %v2351, 2
        %v2355 = vrot.slane %v2352, 2
        %v2356 = vsel %vm2353, %v2354, %v2355
        %v2375 = vunpack.c.l.b16 %v2327
        %v2376 = vunpack.c.l.b16 %v2328
        %v2377 = vunpack.c.l.b16 %v2329
        %v2378 = vunpack.c.l.b16 %v2330
        %v2379 = vunpack.c.l.b16 %v2331
        %v2380 = vunpack.c.l.b16 %v2332
        %v2381 = vunpack.c.l.b16 %v2333
        %v2382 = vunpack.c.l.b16 %v2334
        %v2383 = vunpack.c.l.b16 %v2335
        %v2384 = vunpack.c.l.b16 %v2336
        %v2385 = vunpack.c.l.b16 %v2337
        %v2386 = vunpack.c.l.b16 %v2338
        %v2387 = vunpack.c.l.b16 %v2339
        %v2388 = vunpack.c.l.b16 %v2340
        %v2389 = vunpack.c.l.b16 %v2341
        %v2390 = vunpack.c.l.b16 %v2342
        %v2391 = vpack.c.b16 %v2376, %v2375
        %v2392 = vpack.c.b16 %v2378, %v2377
        %v2393 = vpack.c.b16 %v2380, %v2379
        %v2394 = vpack.c.b16 %v2382, %v2381
        %v2395 = vpack.c.b16 %v2384, %v2383
        %v2396 = vpack.c.b16 %v2386, %v2385
        %v2397 = vpack.c.b16 %v2388, %v2387
        %v2398 = vpack.c.b16 %v2390, %v2389
        %2407 = vmatprep.subr.bf16.mxu0 0
        %2408 = vmatpush1.bf16.msra.mxu0 %v2398
        %2409 = vmatprep.subr.bf16.mxu0 0
        %2410 = vmatpush1.bf16.msra.mxu0 %v2397
        %2411 = vmatprep.subr.bf16.mxu0 0
        %2412 = vmatpush1.bf16.msra.mxu0 %v2396
        %2413 = vmatprep.subr.bf16.mxu0 0
        %2414 = vmatpush1.bf16.msra.mxu0 %v2395
        %2415 = vmatprep.subr.bf16.mxu0 0
        %2416 = vmatpush1.bf16.msra.mxu0 %v2394
        %2417 = vmatprep.subr.bf16.mxu0 0
        %2418 = vmatpush1.bf16.msra.mxu0 %v2393
        %2419 = vmatprep.subr.bf16.mxu0 0
        %2420 = vmatpush1.bf16.msra.mxu0 %v2392
        %2421 = vmatprep.subr.bf16.mxu0 0
        %2422 = vmatpush1.bf16.msra.mxu0 %v2391
        %2423 = vmatprep.subr.bf16.mxu0 0
        %2424 = vmatpush2.bf16.msra.mxu0 0
        %2425 = vmatprep.subr.bf16.mxu0 0
        %2426 = vmatpush2.bf16.msra.mxu0 0
        %2427 = vmatprep.subr.bf16.mxu0 0
        %2428 = vmatpush2.bf16.msra.mxu0 0
        %2429 = vmatprep.subr.bf16.mxu0 0
        %2430 = vmatpush2.bf16.msra.mxu0 0
        %2431 = vmatprep.subr.bf16.mxu0 0
        %2432 = vmatpush2.bf16.msra.mxu0 0
        %2433 = vmatprep.subr.bf16.mxu0 0
        %2434 = vmatpush2.bf16.msra.mxu0 0
        %2435 = vmatprep.subr.bf16.mxu0 0
        %2436 = vmatpush2.bf16.msra.mxu0 0
        %2437 = vmatprep.subr.bf16.mxu0 0
        %2438 = vmatpush2.bf16.msra.mxu0 0
        %2439 = vmatprep.mubr.bf16.mxu0 0
        %2440 = vmatmul.mubr.bf16.gmra.mxu0 %v2356
        %v2441 = vpop.f32.mrf.mxu0
        %v2442 = vadd.f32 0.0, %v2441
        %v2443 = vpop.f32.mrf.mxu0
        %v2444 = vpop.f32.mrf.mxu0
        %v2445 = vadd.f32 0.0, %v2444
        %v2446 = vpop.f32.mrf.mxu0
        %2447 = vmatprep.mubr.bf16.mxu0 0
        %2448 = vmatmul.mubr.bf16.gmra.mxu0 %v2355
        %v2449 = vpop.f32.mrf.mxu0
        %v2450 = vadd.f32 0.0, %v2449
        %v2451 = vpop.f32.mrf.mxu0
        %v2452 = vpop.f32.mrf.mxu0
        %v2453 = vpop.f32.mrf.mxu0
        %2454 = vdwg.mxu0
        %v2455 = vadd.f32 %v2319, %v2442
        %v2456 = vadd.f32 %v2320, %v2445
        %v2457 = vadd.f32 %v2321, %v2450
        %v2458 = vld [vmem:[#allocation2 + $0x10] sm:$0x3]
        %s2459 = scalar_lea.vmem %s6, 448
        %v2460 = vld [vmem:[%s2459] sm:$0xf]
        %v2461 = vld [vmem:[%s2459 + $0x4] sm:$0xf]
        %v2462 = vld [vmem:[%s2459 + $0x8] sm:$0xf]
        %v2463 = vld [vmem:[%s2459 + $0xc] sm:$0xf]
        %v2464 = vld [vmem:[%s2459 + $0x10] sm:$0xf]
        %v2465 = vld [vmem:[%s2459 + $0x14] sm:$0xf]
        %v2466 = vld [vmem:[%s2459 + $0x18] sm:$0xf]
        %v2467 = vld [vmem:[%s2459 + $0x1c] sm:$0xf]
        %v2468 = vld [vmem:[%s2459 + $0x20] sm:$0xf]
        %v2469 = vld [vmem:[%s2459 + $0x24] sm:$0xf]
        %v2470 = vld [vmem:[%s2459 + $0x28] sm:$0xf]
        %v2471 = vld [vmem:[%s2459 + $0x2c] sm:$0xf]
        %v2472 = vld [vmem:[%s2459 + $0x30] sm:$0xf]
        %v2473 = vld [vmem:[%s2459 + $0x34] sm:$0xf]
        %v2474 = vld [vmem:[%s2459 + $0x38] sm:$0xf]
        %v2475 = vld [vmem:[%s2459 + $0x3c] sm:$0xf]
        %v2477 = vunpack.c.l.b16 %v2458
        %v2478 = vpack.c.b16 %v2477, %v2349
        %v2480 = vshrl.u32 %v2351, 16
        %v2482 = vrot.slane %v2480, 2
        %v2483 = vshll.u32 %v2351, 16
        %v2485 = vrot.slane %v2483, 3
        %v2486 = vor.u32 %v2482, %v2485
        %v2488 = vshrl.u32 %v2478, 16
        %v2490 = vrot.slane %v2488, 2
        %v2491 = vshll.u32 %v2478, 16
        %v2493 = vrot.slane %v2491, 3
        %v2494 = vor.u32 %v2490, %v2493
        %v2495 = vsel %vm1041, %v2486, %v2494
        %v2514 = vunpack.c.l.b16 %v2460
        %v2515 = vunpack.c.l.b16 %v2461
        %v2516 = vunpack.c.l.b16 %v2462
        %v2517 = vunpack.c.l.b16 %v2463
        %v2518 = vunpack.c.l.b16 %v2464
        %v2519 = vunpack.c.l.b16 %v2465
        %v2520 = vunpack.c.l.b16 %v2466
        %v2521 = vunpack.c.l.b16 %v2467
        %v2522 = vunpack.c.l.b16 %v2468
        %v2523 = vunpack.c.l.b16 %v2469
        %v2524 = vunpack.c.l.b16 %v2470
        %v2525 = vunpack.c.l.b16 %v2471
        %v2526 = vunpack.c.l.b16 %v2472
        %v2527 = vunpack.c.l.b16 %v2473
        %v2528 = vunpack.c.l.b16 %v2474
        %v2529 = vunpack.c.l.b16 %v2475
        %v2530 = vpack.c.b16 %v2515, %v2514
        %v2531 = vpack.c.b16 %v2517, %v2516
        %v2532 = vpack.c.b16 %v2519, %v2518
        %v2533 = vpack.c.b16 %v2521, %v2520
        %v2534 = vpack.c.b16 %v2523, %v2522
        %v2535 = vpack.c.b16 %v2525, %v2524
        %v2536 = vpack.c.b16 %v2527, %v2526
        %v2537 = vpack.c.b16 %v2529, %v2528
        %2546 = vmatprep.subr.bf16.mxu0 0
        %2547 = vmatpush1.bf16.msra.mxu0 %v2537
        %2548 = vmatprep.subr.bf16.mxu0 0
        %2549 = vmatpush1.bf16.msra.mxu0 %v2536
        %2550 = vmatprep.subr.bf16.mxu0 0
        %2551 = vmatpush1.bf16.msra.mxu0 %v2535
        %2552 = vmatprep.subr.bf16.mxu0 0
        %2553 = vmatpush1.bf16.msra.mxu0 %v2534
        %2554 = vmatprep.subr.bf16.mxu0 0
        %2555 = vmatpush1.bf16.msra.mxu0 %v2533
        %2556 = vmatprep.subr.bf16.mxu0 0
        %2557 = vmatpush1.bf16.msra.mxu0 %v2532
        %2558 = vmatprep.subr.bf16.mxu0 0
        %2559 = vmatpush1.bf16.msra.mxu0 %v2531
        %2560 = vmatprep.subr.bf16.mxu0 0
        %2561 = vmatpush1.bf16.msra.mxu0 %v2530
        %2562 = vmatprep.subr.bf16.mxu0 0
        %2563 = vmatpush2.bf16.msra.mxu0 0
        %2564 = vmatprep.subr.bf16.mxu0 0
        %2565 = vmatpush2.bf16.msra.mxu0 0
        %2566 = vmatprep.subr.bf16.mxu0 0
        %2567 = vmatpush2.bf16.msra.mxu0 0
        %2568 = vmatprep.subr.bf16.mxu0 0
        %2569 = vmatpush2.bf16.msra.mxu0 0
        %2570 = vmatprep.subr.bf16.mxu0 0
        %2571 = vmatpush2.bf16.msra.mxu0 0
        %2572 = vmatprep.subr.bf16.mxu0 0
        %2573 = vmatpush2.bf16.msra.mxu0 0
        %2574 = vmatprep.subr.bf16.mxu0 0
        %2575 = vmatpush2.bf16.msra.mxu0 0
        %2576 = vmatprep.subr.bf16.mxu0 0
        %2577 = vmatpush2.bf16.msra.mxu0 0
        %2578 = vmatprep.mubr.bf16.mxu0 0
        %2579 = vmatmul.mubr.bf16.gmra.mxu0 %v2495
        %v2580 = vpop.f32.mrf.mxu0
        %v2581 = vadd.f32 0.0, %v2580
        %v2582 = vpop.f32.mrf.mxu0
        %v2583 = vpop.f32.mrf.mxu0
        %v2584 = vadd.f32 0.0, %v2583
        %v2585 = vpop.f32.mrf.mxu0
        %2586 = vmatprep.mubr.bf16.mxu0 0
        %2587 = vmatmul.mubr.bf16.gmra.mxu0 %v2494
        %v2588 = vpop.f32.mrf.mxu0
        %v2589 = vadd.f32 0.0, %v2588
        %v2590 = vpop.f32.mrf.mxu0
        %v2591 = vpop.f32.mrf.mxu0
        %v2592 = vpop.f32.mrf.mxu0
        %2593 = vdwg.mxu0
        %v2594 = vadd.f32 %v2455, %v2581
        %v2595 = vadd.f32 %v2456, %v2584
        %v2596 = vadd.f32 %v2457, %v2589
        %v2597 = vld [vmem:[#allocation2 + $0x4] sm:$0x8]
        %s2598 = scalar_lea.vmem %s6, 512
        %v2599 = vld [vmem:[%s2598] sm:$0xf]
        %v2600 = vld [vmem:[%s2598 + $0x4] sm:$0xf]
        %v2601 = vld [vmem:[%s2598 + $0x8] sm:$0xf]
        %v2602 = vld [vmem:[%s2598 + $0xc] sm:$0xf]
        %v2603 = vld [vmem:[%s2598 + $0x10] sm:$0xf]
        %v2604 = vld [vmem:[%s2598 + $0x14] sm:$0xf]
        %v2605 = vld [vmem:[%s2598 + $0x18] sm:$0xf]
        %v2606 = vld [vmem:[%s2598 + $0x1c] sm:$0xf]
        %v2607 = vld [vmem:[%s2598 + $0x20] sm:$0xf]
        %v2608 = vld [vmem:[%s2598 + $0x24] sm:$0xf]
        %v2609 = vld [vmem:[%s2598 + $0x28] sm:$0xf]
        %v2610 = vld [vmem:[%s2598 + $0x2c] sm:$0xf]
        %v2611 = vld [vmem:[%s2598 + $0x30] sm:$0xf]
        %v2612 = vld [vmem:[%s2598 + $0x34] sm:$0xf]
        %v2613 = vld [vmem:[%s2598 + $0x38] sm:$0xf]
        %v2614 = vld [vmem:[%s2598 + $0x3c] sm:$0xf]
        %v2616 = vunpack.c.l.b16 %v2597
        %v2617 = vpack.c.b16 %v2348, %v2616
        %v2618 = vrot.slane %v2617, 3
        %v2619 = vrot.slane %v2478, 3
        %v2620 = vsel %vm1278, %v2618, %v2619
        %v2639 = vunpack.c.l.b16 %v2599
        %v2640 = vunpack.c.l.b16 %v2600
        %v2641 = vunpack.c.l.b16 %v2601
        %v2642 = vunpack.c.l.b16 %v2602
        %v2643 = vunpack.c.l.b16 %v2603
        %v2644 = vunpack.c.l.b16 %v2604
        %v2645 = vunpack.c.l.b16 %v2605
        %v2646 = vunpack.c.l.b16 %v2606
        %v2647 = vunpack.c.l.b16 %v2607
        %v2648 = vunpack.c.l.b16 %v2608
        %v2649 = vunpack.c.l.b16 %v2609
        %v2650 = vunpack.c.l.b16 %v2610
        %v2651 = vunpack.c.l.b16 %v2611
        %v2652 = vunpack.c.l.b16 %v2612
        %v2653 = vunpack.c.l.b16 %v2613
        %v2654 = vunpack.c.l.b16 %v2614
        %v2655 = vpack.c.b16 %v2640, %v2639
        %v2656 = vpack.c.b16 %v2642, %v2641
        %v2657 = vpack.c.b16 %v2644, %v2643
        %v2658 = vpack.c.b16 %v2646, %v2645
        %v2659 = vpack.c.b16 %v2648, %v2647
        %v2660 = vpack.c.b16 %v2650, %v2649
        %v2661 = vpack.c.b16 %v2652, %v2651
        %v2662 = vpack.c.b16 %v2654, %v2653
        %2671 = vmatprep.subr.bf16.mxu0 0
        %2672 = vmatpush1.bf16.msra.mxu0 %v2662
        %2673 = vmatprep.subr.bf16.mxu0 0
        %2674 = vmatpush1.bf16.msra.mxu0 %v2661
        %2675 = vmatprep.subr.bf16.mxu0 0
        %2676 = vmatpush1.bf16.msra.mxu0 %v2660
        %2677 = vmatprep.subr.bf16.mxu0 0
        %2678 = vmatpush1.bf16.msra.mxu0 %v2659
        %2679 = vmatprep.subr.bf16.mxu0 0
        %2680 = vmatpush1.bf16.msra.mxu0 %v2658
        %2681 = vmatprep.subr.bf16.mxu0 0
        %2682 = vmatpush1.bf16.msra.mxu0 %v2657
        %2683 = vmatprep.subr.bf16.mxu0 0
        %2684 = vmatpush1.bf16.msra.mxu0 %v2656
        %2685 = vmatprep.subr.bf16.mxu0 0
        %2686 = vmatpush1.bf16.msra.mxu0 %v2655
        %2687 = vmatprep.subr.bf16.mxu0 0
        %2688 = vmatpush2.bf16.msra.mxu0 0
        %2689 = vmatprep.subr.bf16.mxu0 0
        %2690 = vmatpush2.bf16.msra.mxu0 0
        %2691 = vmatprep.subr.bf16.mxu0 0
        %2692 = vmatpush2.bf16.msra.mxu0 0
        %2693 = vmatprep.subr.bf16.mxu0 0
        %2694 = vmatpush2.bf16.msra.mxu0 0
        %2695 = vmatprep.subr.bf16.mxu0 0
        %2696 = vmatpush2.bf16.msra.mxu0 0
        %2697 = vmatprep.subr.bf16.mxu0 0
        %2698 = vmatpush2.bf16.msra.mxu0 0
        %2699 = vmatprep.subr.bf16.mxu0 0
        %2700 = vmatpush2.bf16.msra.mxu0 0
        %2701 = vmatprep.subr.bf16.mxu0 0
        %2702 = vmatpush2.bf16.msra.mxu0 0
        %2703 = vmatprep.mubr.bf16.mxu0 0
        %2704 = vmatmul.mubr.bf16.gmra.mxu0 %v2620
        %v2705 = vpop.f32.mrf.mxu0
        %v2706 = vadd.f32 0.0, %v2705
        %v2707 = vpop.f32.mrf.mxu0
        %v2708 = vpop.f32.mrf.mxu0
        %v2709 = vadd.f32 0.0, %v2708
        %v2710 = vpop.f32.mrf.mxu0
        %2711 = vmatprep.mubr.bf16.mxu0 0
        %2712 = vmatmul.mubr.bf16.gmra.mxu0 %v2619
        %v2713 = vpop.f32.mrf.mxu0
        %v2714 = vadd.f32 0.0, %v2713
        %v2715 = vpop.f32.mrf.mxu0
        %v2716 = vpop.f32.mrf.mxu0
        %v2717 = vpop.f32.mrf.mxu0
        %2718 = vdwg.mxu0
        %v2719 = vadd.f32 %v2594, %v2706
        %v2720 = vadd.f32 %v2595, %v2709
        %v2721 = vadd.f32 %v2596, %v2714
        %v2722 = vld [vmem:[%s7] sm:$0x1]
        %v2724 = vlaneseq
        %v2725 = vshrl.u32 %v2724, 7
        %v2726 = vsub.s32 0, %v2725
        %v2727 = vrot.slane %v2722, %v2726
        %v2729 = vadd.f32 %v2719, %v2727
        %v2730 = vadd.f32 %v2720, %v2727
        %v2731 = vadd.f32 %v2721, %v2727
        %v2732 = vadd.f32 %v2729, %v1452
        %v2733 = vmax.f32 %v2732, 0.0
        %2734 = vst [vmem:[%s397] sm:$0xf] %v2733
        %vm2737 = vcmask 1040384
        %v2738 = vrot.slane %v1452, 7
        %v2739 = vrot.slane %v1455, 7
        %v2740 = vsel %vm2737, %v2738, %v2739
        %v2743 = vadd.f32 %v2729, %v2738
        %v2744 = vadd.f32 %v2730, %v2740
        %v2745 = vmax.f32 %v2743, 0.0
        %v2746 = vmax.f32 %v2744, 0.0
        %2747 = vst [vmem:[%s397 - $0x2] sm:$0xc0] %v2745
        %2748 = vst [vmem:[%s397 + $0x6] sm:$0x3] %v2746
        %v2749 = vrot.slane %v1455, 6
        %v2751 = vadd.f32 %v2730, %v2749
        %v2752 = vmax.f32 %v2751, 0.0
        %2753 = vst [vmem:[%s397 + $0x4] sm:$0xf0] %v2752
        %vm2755 = vcmask 1042432
        %v2756 = vrot.slane %v1455, 5
        %v2757 = vrot.slane %v1460, 5
        %v2758 = vsel %vm2755, %v2756, %v2757
        %v2760 = vadd.f32 %v2731, %v2758
        %v2761 = vmax.f32 %v2760, 0.0
        %2762 = vst [vmem:[%s397 + $0xa] sm:$0x3c] %v2761
        %s2763 = sand.u32 %s262, 1
        %s2764 = scalar_lea.sflag [#allocation4], %s2763
        %s2765 = sand.u32 %s262, 1
        %s2766 = smul.addr %s2765, 16
        %s2767 = scalar_lea.vmem [#allocation3], %s2766
        // Predicated region
        $region61: #{basic_block_forward.1} parent=59 // pred_check
          %p2768 = pneg %p272
        $region62: #{basic_block_forward.1} parent=59 // pred_check_branch
          %2770 = sbr.rel (%p2768) target = $region64
        $region63: #{basic_block_forward.1} parent=59 // pred_region
          %s2772 = ssub.s32 256, 256
          %2773 = vsyncadd %s2764, %s2772
          %s2774 = smul.addr %s24, 2
          %s2775 = smul.addr %s2774, 128
          %s2776 = scalar_lea.hbm %s10, %s2775
          %s2777 = sshll.u32 %s2767, 4
          %s2778 = int_to_ptr.vmem [resolvable:$true] %s2777
          %2783 = dma.vmem_to_hbm [thread:$0]  %s2778, 256, %s2776, %s2764, 128, 128, 8
        $region64: #{basic_block_forward.1} parent=59 // pred_fallthru
          _
      $region60: #{basic_block_forward.1} parent=5 // pred_fallthru
        _
      %p2784 = scmp.le.s32.totalorder 2, %s19
      // Predicated region
      $region65: #{basic_block_forward.1} parent=5 // pred_check
        %p2785 = pneg %p2784
      $region66: #{basic_block_forward.1} parent=5 // pred_check_branch
        %2787 = sbr.rel (%p2785) target = $region68
      $region67: #{basic_block_forward.1} parent=5 // pred_region
        %s2788 = ssub.s32 %s19, 2
        // Predicated region
        $region69: #{basic_block_forward.1} parent=67 // pred_check
          %p2789 = pneg %p278
        $region70: #{basic_block_forward.1} parent=67 // pred_check_branch
          %2791 = sbr.rel (%p2789) target = $region72
        $region71: #{basic_block_forward.1} parent=67 // pred_region
          %s2792 = sand.u32 %s263, 1
          %s2793 = scalar_lea.sflag [#allocation4], %s2792
          %s2794 = sand.u32 %s263, 1
          %s2795 = smul.addr %s2794, 16
          %s2796 = scalar_lea.vmem [#allocation3], %s2795
          %2797 = dma.done %s2793, 256
        $region72: #{basic_block_forward.1} parent=67 // pred_fallthru
          _
      $region68: #{basic_block_forward.1} parent=5 // pred_fallthru
        _
    $region6: #{basic_block_forward.1} parent=1 // loop_footer
      %s23 = sadd.s32 1, %s19
    $region7: #{basic_block_forward.1} parent=1 // loop_footer_branch
      %18 = sbr.rel target = $region3
    $region8: #{basic_block_forward.1} parent=1 // loop_exit
      _
    %2798 = vsyncpa [#allocation4], 1
    %s2799 = scalar_lea.sflag [#allocation4], 1
    %2800 = vsyncpa %s2799, 1

</llo_original>
